<compile_context>
chip_gen: v5e
topology: v5e:2x2
jax: 0.10.0
libtpu: 0.0.40
codegen_flags: <defaults>
</compile_context>

<pallas_src>
import math
import functools

import jax
import jax.numpy as jnp
from jax.experimental import pallas as pl
from jax.experimental.pallas import tpu as pltpu


def _mha_kernel(xq_ref, xk_ref, xv_ref,
                wq_ref, bq_ref, wk_ref, bk_ref, wv_ref, bv_ref,
                wc_ref, bc_ref, o_ref, *, n_head):
    # xq/xk/xv refs: (BB, T, D) bf16 block; weights (D, D) bf16; biases (1, D) f32.
    BB, T, D = xq_ref.shape
    hd = D // n_head
    scale = 1.0 / math.sqrt(float(hd))

    xq = xq_ref[...].reshape(BB * T, D)
    xk = xk_ref[...].reshape(BB * T, D)
    xv = xv_ref[...].reshape(BB * T, D)

    # Full-width projections on the MXU (bf16 operands, f32 accumulation).
    q = jnp.dot(xq, wq_ref[...], preferred_element_type=jnp.float32) + bq_ref[...]
    k = jnp.dot(xk, wk_ref[...], preferred_element_type=jnp.float32) + bk_ref[...]
    v = jnp.dot(xv, wv_ref[...], preferred_element_type=jnp.float32) + bv_ref[...]

    # Fold 1/sqrt(hd) into q once; cast operands to bf16 for the attention matmuls.
    q = (q * scale).astype(jnp.bfloat16)
    k = k.astype(jnp.bfloat16)
    v = v.astype(jnp.bfloat16)

    # Causal mask (computed once, shared across batch elements and heads).
    row = jax.lax.broadcasted_iota(jnp.int32, (T, T), 0)
    col = jax.lax.broadcasted_iota(jnp.int32, (T, T), 1)
    keep = (col <= row)[None]                      # (1, T, T)

    out_acc = jnp.zeros((BB * T, D), jnp.float32)
    for h in range(n_head):                        # static, small loop
        sl = slice(h * hd, (h + 1) * hd)
        q_h = q[:, sl].reshape(BB, T, hd)
        k_h = k[:, sl].reshape(BB, T, hd)
        v_h = v[:, sl].reshape(BB, T, hd)

        # scores[b,t,s] = sum_d q_h[b,t,d] * k_h[b,s,d]  (no explicit k.T)
        s = jnp.einsum('btd,bsd->bts', q_h, k_h,
                       preferred_element_type=jnp.float32)
        s = jnp.where(keep, s, -1e30)              # large finite neg (NaN-safe)
        m = jnp.max(s, axis=-1, keepdims=True)
        p = jnp.exp(s - m)
        p = p * pl.reciprocal(jnp.sum(p, axis=-1, keepdims=True), approx=True)

        ctx = jnp.einsum('bts,bsd->btd', p.astype(jnp.bfloat16), v_h,
                         preferred_element_type=jnp.float32)       # (BB, T, hd)

        # Output projection accumulated per head (replaces the head concat).
        out_acc = out_acc + jnp.dot(
            ctx.reshape(BB * T, hd).astype(jnp.bfloat16),
            wc_ref[sl, :],
            preferred_element_type=jnp.float32)

    out = out_acc + bc_ref[...]
    o_ref[...] = out.reshape(BB, T, D).astype(o_ref.dtype)


def _pick_block_b(B, T, D, vmem_budget=24 * 1024 * 1024):
    """Largest batch block that keeps >=2 grid steps (v7x) and fits VMEM budget."""
    best = 1
    for bb in range(1, B + 1):
        if B % bb:
            continue
        if B >= 2 and B // bb < 2:
            continue  # keep both v7x TensorCores busy
        # rough per-step VMEM: double-buffered bf16 inputs + f32 output,
        # f32 q/k/v + accumulator intermediates, weights, scores.
        est = 36 * bb * T * D + 8 * D * D + 8 * bb * T * T
        if est <= vmem_budget:
            best = bb
    return best


def multi_head_attention(q, k, v, params, n_head, *, block_b=None):
    """q, k, v: (B, T, D) float32.  params: dict of pre-transposed weights."""
    B, T, D = q.shape
    bb = _pick_block_b(B, T, D) if block_b is None else block_b
    assert B % bb == 0

    # bf16 operands for the MXU; biases stay f32 (added after f32 accumulation).
    qb = q.astype(jnp.bfloat16)
    kb = k.astype(jnp.bfloat16)
    vb = v.astype(jnp.bfloat16)
    wq = params["wq"].astype(jnp.bfloat16)
    wk = params["wk"].astype(jnp.bfloat16)
    wv = params["wv"].astype(jnp.bfloat16)
    wc = params["wc"].astype(jnp.bfloat16)
    bq, bk_, bv_, bc = params["bq"], params["bk"], params["bv"], params["bc"]

    x_spec = pl.BlockSpec((bb, T, D), lambda i: (i, 0, 0))
    w_spec = pl.BlockSpec((D, D), lambda i: (0, 0))
    b_spec = pl.BlockSpec((1, D), lambda i: (0, 0))

    kernel = functools.partial(_mha_kernel, n_head=n_head)

    return pl.pallas_call(
        kernel,
        out_shape=jax.ShapeDtypeStruct((B, T, D), jnp.float32),
        grid_spec=pltpu.PrefetchScalarGridSpec(
            num_scalar_prefetch=0,
            grid=(B // bb,),
            in_specs=[x_spec, x_spec, x_spec,
                      w_spec, b_spec, w_spec, b_spec, w_spec, b_spec,
                      w_spec, b_spec],
            out_specs=pl.BlockSpec((bb, T, D), lambda i: (i, 0, 0)),
        ),
        compiler_params=pltpu.CompilerParams(
            dimension_semantics=("parallel",)),
    )(qb, kb, vb, wq, bq, wk, bk_, wv, bv_, wc, bc)


def init_params(key, d_model):
    """Deterministic nn.Linear-style init; weights returned pre-transposed (D_in, D_out)."""
    bound = 1.0 / math.sqrt(d_model)
    keys = jax.random.split(key, 8)

    def lin(kw, kb):
        w_pt = jax.random.uniform(kw, (d_model, d_model), jnp.float32, -bound, bound)
        b = jax.random.uniform(kb, (d_model,), jnp.float32, -bound, bound)
        return w_pt.T, b.reshape(1, d_model)      # pre-transposed for x @ W

    wq, bq = lin(keys[0], keys[1])
    wk, bk = lin(keys[2], keys[3])
    wv, bv = lin(keys[4], keys[5])
    wc, bc = lin(keys[6], keys[7])
    return {"wq": wq, "bq": bq, "wk": wk, "bk": bk,
            "wv": wv, "bv": bv, "wc": wc, "bc": bc}


def reference_mha(q, k, v, params, n_head):
    """Plain-JAX f32 reference with the same (intended) semantics."""
    B, T, D = q.shape
    hd = D // n_head
    qp = q @ params["wq"] + params["bq"]
    kp = k @ params["wk"] + params["bk"]
    vp = v @ params["wv"] + params["bv"]

    def split(x):  # (B,T,D) -> (B,H,T,hd)
        return x.reshape(B, T, n_head, hd).transpose(0, 2, 1, 3)

    qh, kh, vh = split(qp), split(kp), split(vp)
    scores = jnp.einsum("bhqd,bhkd->bhqk", qh, kh) / math.sqrt(hd)
    mask = jnp.tril(jnp.ones((T, T), dtype=bool))
    scores = jnp.where(mask[None, None], scores, -jnp.inf)
    p = jax.nn.softmax(scores, axis=-1)
    ctx = jnp.einsum("bhqk,bhkd->bhqd", p, vh)
    ctx = ctx.transpose(0, 2, 1, 3).reshape(B, T, D)
    return ctx @ params["wc"] + params["bc"]


if __name__ == "__main__":
    # Small shapes consistent with the module (module default: B=128, T=64, D=512, H=8).
    B, T, D, H = 8, 16, 32, 4
    key = jax.random.PRNGKey(0)
    k_x, k_p = jax.random.split(key)
    x = jax.random.normal(k_x, (B, T, D), jnp.float32)
    params = init_params(k_p, D)

    out = multi_head_attention(x, x, x, params, H)
    out = jax.block_until_ready(out)

    ref = reference_mha(x, x, x, params, H)
    assert out.shape == (B, T, D)
    # bf16 matmul operands + approx reciprocal => loosen tolerance vs f32 reference.
    max_err = float(jnp.max(jnp.abs(out - ref)))
    assert jnp.allclose(out, ref, atol=5e-2, rtol=5e-2), (
        f"mismatch vs JAX reference (max abs err {max_err})")
    print("KERNEL_OK")
</pallas_src>

<mosaic_0001>
module attributes {stable_mosaic.version = 11 : i64} {
  func.func @_mha_kernel(%arg0: i32, %arg1: memref<4x16x32xbf16, #tpu.memory_space<vmem>>, %arg2: memref<4x16x32xbf16, #tpu.memory_space<vmem>>, %arg3: memref<4x16x32xbf16, #tpu.memory_space<vmem>>, %arg4: memref<32x32xbf16, #tpu.memory_space<vmem>>, %arg5: memref<1x32xf32, #tpu.memory_space<vmem>>, %arg6: memref<32x32xbf16, #tpu.memory_space<vmem>>, %arg7: memref<1x32xf32, #tpu.memory_space<vmem>>, %arg8: memref<32x32xbf16, #tpu.memory_space<vmem>>, %arg9: memref<1x32xf32, #tpu.memory_space<vmem>>, %arg10: memref<32x32xbf16, #tpu.memory_space<vmem>>, %arg11: memref<1x32xf32, #tpu.memory_space<vmem>>, %arg12: memref<4x16x32xf32, #tpu.memory_space<vmem>>) attributes {dimension_semantics = [#tpu.dimension_semantics<parallel>], iteration_bounds = array<i64: 2>, scalar_prefetch = 0 : i64, scratch_operands = 0 : i64, tpu.core_type = #tpu.core_type<tc>, window_params = [{transform_indices = @transform_0, window_bounds = array<i64: 4, 16, 32>}, {transform_indices = @transform_1, window_bounds = array<i64: 4, 16, 32>}, {transform_indices = @transform_2, window_bounds = array<i64: 4, 16, 32>}, {pipeline_mode = #tpu.pipeline_mode<synchronous>, transform_indices = @transform_3, window_bounds = array<i64: 32, 32>}, {pipeline_mode = #tpu.pipeline_mode<synchronous>, transform_indices = @transform_4, window_bounds = array<i64: 1, 32>}, {pipeline_mode = #tpu.pipeline_mode<synchronous>, transform_indices = @transform_5, window_bounds = array<i64: 32, 32>}, {pipeline_mode = #tpu.pipeline_mode<synchronous>, transform_indices = @transform_6, window_bounds = array<i64: 1, 32>}, {pipeline_mode = #tpu.pipeline_mode<synchronous>, transform_indices = @transform_7, window_bounds = array<i64: 32, 32>}, {pipeline_mode = #tpu.pipeline_mode<synchronous>, transform_indices = @transform_8, window_bounds = array<i64: 1, 32>}, {pipeline_mode = #tpu.pipeline_mode<synchronous>, transform_indices = @transform_9, window_bounds = array<i64: 32, 32>}, {pipeline_mode = #tpu.pipeline_mode<synchronous>, transform_indices = @transform_10, window_bounds = array<i64: 1, 32>}, {transform_indices = @transform_11, window_bounds = array<i64: 4, 16, 32>}]} {
    %c0 = arith.constant 0 : index
    %c0_0 = arith.constant 0 : index
    %c0_1 = arith.constant 0 : index
    %0 = vector.load %arg1[%c0, %c0_0, %c0_1] : memref<4x16x32xbf16, #tpu.memory_space<vmem>>, vector<4x16x32xbf16>
    %1 = vector.shape_cast %0 : vector<4x16x32xbf16> to vector<64x32xbf16>
    %c0_2 = arith.constant 0 : index
    %c0_3 = arith.constant 0 : index
    %c0_4 = arith.constant 0 : index
    %2 = vector.load %arg2[%c0_2, %c0_3, %c0_4] : memref<4x16x32xbf16, #tpu.memory_space<vmem>>, vector<4x16x32xbf16>
    %3 = vector.shape_cast %2 : vector<4x16x32xbf16> to vector<64x32xbf16>
    %c0_5 = arith.constant 0 : index
    %c0_6 = arith.constant 0 : index
    %c0_7 = arith.constant 0 : index
    %4 = vector.load %arg3[%c0_5, %c0_6, %c0_7] : memref<4x16x32xbf16, #tpu.memory_space<vmem>>, vector<4x16x32xbf16>
    %5 = vector.shape_cast %4 : vector<4x16x32xbf16> to vector<64x32xbf16>
    %c0_8 = arith.constant 0 : index
    %c0_9 = arith.constant 0 : index
    %6 = vector.load %arg4[%c0_8, %c0_9] : memref<32x32xbf16, #tpu.memory_space<vmem>>, vector<32x32xbf16>
    %cst = arith.constant dense<0.000000e+00> : vector<64x32xf32>
    %7 = tpu.matmul %1, %6, %cst {dimension_numbers = #tpu.dot_dimension_numbers<[1], [0], [0], [1], [0, 0, 1, 1], [], []>} : vector<64x32xbf16>, vector<32x32xbf16>, vector<64x32xf32> -> vector<64x32xf32>
    %c0_10 = arith.constant 0 : index
    %c0_11 = arith.constant 0 : index
    %8 = vector.load %arg5[%c0_10, %c0_11] : memref<1x32xf32, #tpu.memory_space<vmem>>, vector<1x32xf32>
    %9 = vector.broadcast %8 : vector<1x32xf32> to vector<64x32xf32>
    %10 = arith.addf %7, %9 : vector<64x32xf32>
    %c0_12 = arith.constant 0 : index
    %c0_13 = arith.constant 0 : index
    %11 = vector.load %arg6[%c0_12, %c0_13] : memref<32x32xbf16, #tpu.memory_space<vmem>>, vector<32x32xbf16>
    %cst_14 = arith.constant dense<0.000000e+00> : vector<64x32xf32>
    %12 = tpu.matmul %3, %11, %cst_14 {dimension_numbers = #tpu.dot_dimension_numbers<[1], [0], [0], [1], [0, 0, 1, 1], [], []>} : vector<64x32xbf16>, vector<32x32xbf16>, vector<64x32xf32> -> vector<64x32xf32>
    %c0_15 = arith.constant 0 : index
    %c0_16 = arith.constant 0 : index
    %13 = vector.load %arg7[%c0_15, %c0_16] : memref<1x32xf32, #tpu.memory_space<vmem>>, vector<1x32xf32>
    %14 = vector.broadcast %13 : vector<1x32xf32> to vector<64x32xf32>
    %15 = arith.addf %12, %14 : vector<64x32xf32>
    %c0_17 = arith.constant 0 : index
    %c0_18 = arith.constant 0 : index
    %16 = vector.load %arg8[%c0_17, %c0_18] : memref<32x32xbf16, #tpu.memory_space<vmem>>, vector<32x32xbf16>
    %cst_19 = arith.constant dense<0.000000e+00> : vector<64x32xf32>
    %17 = tpu.matmul %5, %16, %cst_19 {dimension_numbers = #tpu.dot_dimension_numbers<[1], [0], [0], [1], [0, 0, 1, 1], [], []>} : vector<64x32xbf16>, vector<32x32xbf16>, vector<64x32xf32> -> vector<64x32xf32>
    %c0_20 = arith.constant 0 : index
    %c0_21 = arith.constant 0 : index
    %18 = vector.load %arg9[%c0_20, %c0_21] : memref<1x32xf32, #tpu.memory_space<vmem>>, vector<1x32xf32>
    %19 = vector.broadcast %18 : vector<1x32xf32> to vector<64x32xf32>
    %20 = arith.addf %17, %19 : vector<64x32xf32>
    %cst_22 = arith.constant 0.353553385 : f32
    %21 = vector.broadcast %cst_22 : f32 to vector<64x32xf32>
    %22 = arith.mulf %10, %21 : vector<64x32xf32>
    %23 = arith.truncf %22 : vector<64x32xf32> to vector<64x32xbf16>
    %24 = arith.truncf %15 : vector<64x32xf32> to vector<64x32xbf16>
    %25 = arith.truncf %20 : vector<64x32xf32> to vector<64x32xbf16>
    %26 = tpu.iota {dimensions = array<i32: 0>} : vector<16x16xi32>
    %27 = tpu.iota {dimensions = array<i32: 1>} : vector<16x16xi32>
    %28 = arith.cmpi sle, %27, %26 : vector<16x16xi32>
    %29 = vector.shape_cast %28 : vector<16x16xi1> to vector<1x16x16xi1>
    %cst_23 = arith.constant 0.000000e+00 : f32
    %30 = vector.broadcast %cst_23 : f32 to vector<64x32xf32>
    %31 = vector.extract_strided_slice %23 {offsets = [0, 0], sizes = [64, 8], strides = [1, 1]} : vector<64x32xbf16> to vector<64x8xbf16>
    %32 = vector.shape_cast %31 : vector<64x8xbf16> to vector<4x16x8xbf16>
    %33 = vector.extract_strided_slice %24 {offsets = [0, 0], sizes = [64, 8], strides = [1, 1]} : vector<64x32xbf16> to vector<64x8xbf16>
    %34 = vector.shape_cast %33 : vector<64x8xbf16> to vector<4x16x8xbf16>
    %35 = vector.extract_strided_slice %25 {offsets = [0, 0], sizes = [64, 8], strides = [1, 1]} : vector<64x32xbf16> to vector<64x8xbf16>
    %36 = vector.shape_cast %35 : vector<64x8xbf16> to vector<4x16x8xbf16>
    "tpu.trace_start"() <{level = 10 : i32, message = "btd,bsd->bts"}> : () -> ()
    %cst_24 = arith.constant dense<0.000000e+00> : vector<4x16x16xf32>
    %37 = tpu.matmul %32, %34, %cst_24 {dimension_numbers = #tpu.dot_dimension_numbers<[2], [2], [1], [1], [0, 0, 0, 1, 1, 1], [0], [0]>} : vector<4x16x8xbf16>, vector<4x16x8xbf16>, vector<4x16x16xf32> -> vector<4x16x16xf32>
    %cst_25 = arith.constant -1.000000e+30 : f32
    "tpu.trace_stop"() : () -> ()
    %38 = vector.shape_cast %29 : vector<1x16x16xi1> to vector<1x16x16xi1>
    %39 = vector.broadcast %38 : vector<1x16x16xi1> to vector<4x16x16xi1>
    %40 = vector.broadcast %cst_25 : f32 to vector<4x16x16xf32>
    %41 = arith.select %39, %37, %40 : vector<4x16x16xi1>, vector<4x16x16xf32>
    %cst_26 = arith.constant dense<0xFF800000> : vector<4x16xf32>
    %42 = vector.multi_reduction <maximumf>, %41, %cst_26 [2] : vector<4x16x16xf32> to vector<4x16xf32>
    %43 = vector.shape_cast %42 : vector<4x16xf32> to vector<4x16x1xf32>
    %44 = vector.broadcast %43 : vector<4x16x1xf32> to vector<4x16x16xf32>
    %45 = arith.subf %41, %44 : vector<4x16x16xf32>
    %46 = math.exp %45 : vector<4x16x16xf32>
    %cst_27 = arith.constant dense<0.000000e+00> : vector<4x16xf32>
    %47 = vector.multi_reduction <add>, %46, %cst_27 [2] : vector<4x16x16xf32> to vector<4x16xf32>
    %48 = vector.shape_cast %47 : vector<4x16xf32> to vector<4x16x1xf32>
    %49 = tpu.reciprocal %48 {approx = true} : vector<4x16x1xf32> -> vector<4x16x1xf32>
    %50 = vector.broadcast %49 : vector<4x16x1xf32> to vector<4x16x16xf32>
    %51 = arith.mulf %46, %50 : vector<4x16x16xf32>
    %52 = arith.truncf %51 : vector<4x16x16xf32> to vector<4x16x16xbf16>
    "tpu.trace_start"() <{level = 10 : i32, message = "bts,bsd->btd"}> : () -> ()
    %cst_28 = arith.constant dense<0.000000e+00> : vector<4x16x8xf32>
    %53 = tpu.matmul %52, %36, %cst_28 {dimension_numbers = #tpu.dot_dimension_numbers<[2], [1], [1], [2], [0, 0, 0, 1, 1, 2], [0], [0]>} : vector<4x16x16xbf16>, vector<4x16x8xbf16>, vector<4x16x8xf32> -> vector<4x16x8xf32>
    "tpu.trace_stop"() : () -> ()
    %54 = vector.shape_cast %53 : vector<4x16x8xf32> to vector<64x8xf32>
    %55 = arith.truncf %54 : vector<64x8xf32> to vector<64x8xbf16>
    %c0_29 = arith.constant 0 : index
    %c0_30 = arith.constant 0 : index
    %56 = vector.load %arg10[%c0_29, %c0_30] : memref<32x32xbf16, #tpu.memory_space<vmem>>, vector<8x32xbf16>
    %cst_31 = arith.constant dense<0.000000e+00> : vector<64x32xf32>
    %57 = tpu.matmul %55, %56, %cst_31 {dimension_numbers = #tpu.dot_dimension_numbers<[1], [0], [0], [1], [0, 0, 1, 1], [], []>} : vector<64x8xbf16>, vector<8x32xbf16>, vector<64x32xf32> -> vector<64x32xf32>
    %58 = arith.addf %30, %57 : vector<64x32xf32>
    %59 = vector.extract_strided_slice %23 {offsets = [0, 8], sizes = [64, 8], strides = [1, 1]} : vector<64x32xbf16> to vector<64x8xbf16>
    %60 = vector.shape_cast %59 : vector<64x8xbf16> to vector<4x16x8xbf16>
    %61 = vector.extract_strided_slice %24 {offsets = [0, 8], sizes = [64, 8], strides = [1, 1]} : vector<64x32xbf16> to vector<64x8xbf16>
    %62 = vector.shape_cast %61 : vector<64x8xbf16> to vector<4x16x8xbf16>
    %63 = vector.extract_strided_slice %25 {offsets = [0, 8], sizes = [64, 8], strides = [1, 1]} : vector<64x32xbf16> to vector<64x8xbf16>
    %64 = vector.shape_cast %63 : vector<64x8xbf16> to vector<4x16x8xbf16>
    "tpu.trace_start"() <{level = 10 : i32, message = "btd,bsd->bts"}> : () -> ()
    %cst_32 = arith.constant dense<0.000000e+00> : vector<4x16x16xf32>
    %65 = tpu.matmul %60, %62, %cst_32 {dimension_numbers = #tpu.dot_dimension_numbers<[2], [2], [1], [1], [0, 0, 0, 1, 1, 1], [0], [0]>} : vector<4x16x8xbf16>, vector<4x16x8xbf16>, vector<4x16x16xf32> -> vector<4x16x16xf32>
    %cst_33 = arith.constant -1.000000e+30 : f32
    "tpu.trace_stop"() : () -> ()
    %66 = vector.shape_cast %29 : vector<1x16x16xi1> to vector<1x16x16xi1>
    %67 = vector.broadcast %66 : vector<1x16x16xi1> to vector<4x16x16xi1>
    %68 = vector.broadcast %cst_33 : f32 to vector<4x16x16xf32>
    %69 = arith.select %67, %65, %68 : vector<4x16x16xi1>, vector<4x16x16xf32>
    %cst_34 = arith.constant dense<0xFF800000> : vector<4x16xf32>
    %70 = vector.multi_reduction <maximumf>, %69, %cst_34 [2] : vector<4x16x16xf32> to vector<4x16xf32>
    %71 = vector.shape_cast %70 : vector<4x16xf32> to vector<4x16x1xf32>
    %72 = vector.broadcast %71 : vector<4x16x1xf32> to vector<4x16x16xf32>
    %73 = arith.subf %69, %72 : vector<4x16x16xf32>
    %74 = math.exp %73 : vector<4x16x16xf32>
    %cst_35 = arith.constant dense<0.000000e+00> : vector<4x16xf32>
    %75 = vector.multi_reduction <add>, %74, %cst_35 [2] : vector<4x16x16xf32> to vector<4x16xf32>
    %76 = vector.shape_cast %75 : vector<4x16xf32> to vector<4x16x1xf32>
    %77 = tpu.reciprocal %76 {approx = true} : vector<4x16x1xf32> -> vector<4x16x1xf32>
    %78 = vector.broadcast %77 : vector<4x16x1xf32> to vector<4x16x16xf32>
    %79 = arith.mulf %74, %78 : vector<4x16x16xf32>
    %80 = arith.truncf %79 : vector<4x16x16xf32> to vector<4x16x16xbf16>
    "tpu.trace_start"() <{level = 10 : i32, message = "bts,bsd->btd"}> : () -> ()
    %cst_36 = arith.constant dense<0.000000e+00> : vector<4x16x8xf32>
    %81 = tpu.matmul %80, %64, %cst_36 {dimension_numbers = #tpu.dot_dimension_numbers<[2], [1], [1], [2], [0, 0, 0, 1, 1, 2], [0], [0]>} : vector<4x16x16xbf16>, vector<4x16x8xbf16>, vector<4x16x8xf32> -> vector<4x16x8xf32>
    "tpu.trace_stop"() : () -> ()
    %82 = vector.shape_cast %81 : vector<4x16x8xf32> to vector<64x8xf32>
    %83 = arith.truncf %82 : vector<64x8xf32> to vector<64x8xbf16>
    %c8 = arith.constant 8 : index
    %c0_37 = arith.constant 0 : index
    %84 = vector.load %arg10[%c8, %c0_37] : memref<32x32xbf16, #tpu.memory_space<vmem>>, vector<8x32xbf16>
    %cst_38 = arith.constant dense<0.000000e+00> : vector<64x32xf32>
    %85 = tpu.matmul %83, %84, %cst_38 {dimension_numbers = #tpu.dot_dimension_numbers<[1], [0], [0], [1], [0, 0, 1, 1], [], []>} : vector<64x8xbf16>, vector<8x32xbf16>, vector<64x32xf32> -> vector<64x32xf32>
    %86 = arith.addf %58, %85 : vector<64x32xf32>
    %87 = vector.extract_strided_slice %23 {offsets = [0, 16], sizes = [64, 8], strides = [1, 1]} : vector<64x32xbf16> to vector<64x8xbf16>
    %88 = vector.shape_cast %87 : vector<64x8xbf16> to vector<4x16x8xbf16>
    %89 = vector.extract_strided_slice %24 {offsets = [0, 16], sizes = [64, 8], strides = [1, 1]} : vector<64x32xbf16> to vector<64x8xbf16>
    %90 = vector.shape_cast %89 : vector<64x8xbf16> to vector<4x16x8xbf16>
    %91 = vector.extract_strided_slice %25 {offsets = [0, 16], sizes = [64, 8], strides = [1, 1]} : vector<64x32xbf16> to vector<64x8xbf16>
    %92 = vector.shape_cast %91 : vector<64x8xbf16> to vector<4x16x8xbf16>
    "tpu.trace_start"() <{level = 10 : i32, message = "btd,bsd->bts"}> : () -> ()
    %cst_39 = arith.constant dense<0.000000e+00> : vector<4x16x16xf32>
    %93 = tpu.matmul %88, %90, %cst_39 {dimension_numbers = #tpu.dot_dimension_numbers<[2], [2], [1], [1], [0, 0, 0, 1, 1, 1], [0], [0]>} : vector<4x16x8xbf16>, vector<4x16x8xbf16>, vector<4x16x16xf32> -> vector<4x16x16xf32>
    %cst_40 = arith.constant -1.000000e+30 : f32
    "tpu.trace_stop"() : () -> ()
    %94 = vector.shape_cast %29 : vector<1x16x16xi1> to vector<1x16x16xi1>
    %95 = vector.broadcast %94 : vector<1x16x16xi1> to vector<4x16x16xi1>
    %96 = vector.broadcast %cst_40 : f32 to vector<4x16x16xf32>
    %97 = arith.select %95, %93, %96 : vector<4x16x16xi1>, vector<4x16x16xf32>
    %cst_41 = arith.constant dense<0xFF800000> : vector<4x16xf32>
    %98 = vector.multi_reduction <maximumf>, %97, %cst_41 [2] : vector<4x16x16xf32> to vector<4x16xf32>
    %99 = vector.shape_cast %98 : vector<4x16xf32> to vector<4x16x1xf32>
    %100 = vector.broadcast %99 : vector<4x16x1xf32> to vector<4x16x16xf32>
    %101 = arith.subf %97, %100 : vector<4x16x16xf32>
    %102 = math.exp %101 : vector<4x16x16xf32>
    %cst_42 = arith.constant dense<0.000000e+00> : vector<4x16xf32>
    %103 = vector.multi_reduction <add>, %102, %cst_42 [2] : vector<4x16x16xf32> to vector<4x16xf32>
    %104 = vector.shape_cast %103 : vector<4x16xf32> to vector<4x16x1xf32>
    %105 = tpu.reciprocal %104 {approx = true} : vector<4x16x1xf32> -> vector<4x16x1xf32>
    %106 = vector.broadcast %105 : vector<4x16x1xf32> to vector<4x16x16xf32>
    %107 = arith.mulf %102, %106 : vector<4x16x16xf32>
    %108 = arith.truncf %107 : vector<4x16x16xf32> to vector<4x16x16xbf16>
    "tpu.trace_start"() <{level = 10 : i32, message = "bts,bsd->btd"}> : () -> ()
    %cst_43 = arith.constant dense<0.000000e+00> : vector<4x16x8xf32>
    %109 = tpu.matmul %108, %92, %cst_43 {dimension_numbers = #tpu.dot_dimension_numbers<[2], [1], [1], [2], [0, 0, 0, 1, 1, 2], [0], [0]>} : vector<4x16x16xbf16>, vector<4x16x8xbf16>, vector<4x16x8xf32> -> vector<4x16x8xf32>
    "tpu.trace_stop"() : () -> ()
    %110 = vector.shape_cast %109 : vector<4x16x8xf32> to vector<64x8xf32>
    %111 = arith.truncf %110 : vector<64x8xf32> to vector<64x8xbf16>
    %c16 = arith.constant 16 : index
    %c0_44 = arith.constant 0 : index
    %112 = vector.load %arg10[%c16, %c0_44] : memref<32x32xbf16, #tpu.memory_space<vmem>>, vector<8x32xbf16>
    %cst_45 = arith.constant dense<0.000000e+00> : vector<64x32xf32>
    %113 = tpu.matmul %111, %112, %cst_45 {dimension_numbers = #tpu.dot_dimension_numbers<[1], [0], [0], [1], [0, 0, 1, 1], [], []>} : vector<64x8xbf16>, vector<8x32xbf16>, vector<64x32xf32> -> vector<64x32xf32>
    %114 = arith.addf %86, %113 : vector<64x32xf32>
    %115 = vector.extract_strided_slice %23 {offsets = [0, 24], sizes = [64, 8], strides = [1, 1]} : vector<64x32xbf16> to vector<64x8xbf16>
    %116 = vector.shape_cast %115 : vector<64x8xbf16> to vector<4x16x8xbf16>
    %117 = vector.extract_strided_slice %24 {offsets = [0, 24], sizes = [64, 8], strides = [1, 1]} : vector<64x32xbf16> to vector<64x8xbf16>
    %118 = vector.shape_cast %117 : vector<64x8xbf16> to vector<4x16x8xbf16>
    %119 = vector.extract_strided_slice %25 {offsets = [0, 24], sizes = [64, 8], strides = [1, 1]} : vector<64x32xbf16> to vector<64x8xbf16>
    %120 = vector.shape_cast %119 : vector<64x8xbf16> to vector<4x16x8xbf16>
    "tpu.trace_start"() <{level = 10 : i32, message = "btd,bsd->bts"}> : () -> ()
    %cst_46 = arith.constant dense<0.000000e+00> : vector<4x16x16xf32>
    %121 = tpu.matmul %116, %118, %cst_46 {dimension_numbers = #tpu.dot_dimension_numbers<[2], [2], [1], [1], [0, 0, 0, 1, 1, 1], [0], [0]>} : vector<4x16x8xbf16>, vector<4x16x8xbf16>, vector<4x16x16xf32> -> vector<4x16x16xf32>
    %cst_47 = arith.constant -1.000000e+30 : f32
    "tpu.trace_stop"() : () -> ()
    %122 = vector.shape_cast %29 : vector<1x16x16xi1> to vector<1x16x16xi1>
    %123 = vector.broadcast %122 : vector<1x16x16xi1> to vector<4x16x16xi1>
    %124 = vector.broadcast %cst_47 : f32 to vector<4x16x16xf32>
    %125 = arith.select %123, %121, %124 : vector<4x16x16xi1>, vector<4x16x16xf32>
    %cst_48 = arith.constant dense<0xFF800000> : vector<4x16xf32>
    %126 = vector.multi_reduction <maximumf>, %125, %cst_48 [2] : vector<4x16x16xf32> to vector<4x16xf32>
    %127 = vector.shape_cast %126 : vector<4x16xf32> to vector<4x16x1xf32>
    %128 = vector.broadcast %127 : vector<4x16x1xf32> to vector<4x16x16xf32>
    %129 = arith.subf %125, %128 : vector<4x16x16xf32>
    %130 = math.exp %129 : vector<4x16x16xf32>
    %cst_49 = arith.constant dense<0.000000e+00> : vector<4x16xf32>
    %131 = vector.multi_reduction <add>, %130, %cst_49 [2] : vector<4x16x16xf32> to vector<4x16xf32>
    %132 = vector.shape_cast %131 : vector<4x16xf32> to vector<4x16x1xf32>
    %133 = tpu.reciprocal %132 {approx = true} : vector<4x16x1xf32> -> vector<4x16x1xf32>
    %134 = vector.broadcast %133 : vector<4x16x1xf32> to vector<4x16x16xf32>
    %135 = arith.mulf %130, %134 : vector<4x16x16xf32>
    %136 = arith.truncf %135 : vector<4x16x16xf32> to vector<4x16x16xbf16>
    "tpu.trace_start"() <{level = 10 : i32, message = "bts,bsd->btd"}> : () -> ()
    %cst_50 = arith.constant dense<0.000000e+00> : vector<4x16x8xf32>
    %137 = tpu.matmul %136, %120, %cst_50 {dimension_numbers = #tpu.dot_dimension_numbers<[2], [1], [1], [2], [0, 0, 0, 1, 1, 2], [0], [0]>} : vector<4x16x16xbf16>, vector<4x16x8xbf16>, vector<4x16x8xf32> -> vector<4x16x8xf32>
    "tpu.trace_stop"() : () -> ()
    %138 = vector.shape_cast %137 : vector<4x16x8xf32> to vector<64x8xf32>
    %139 = arith.truncf %138 : vector<64x8xf32> to vector<64x8xbf16>
    %c24 = arith.constant 24 : index
    %c0_51 = arith.constant 0 : index
    %140 = vector.load %arg10[%c24, %c0_51] : memref<32x32xbf16, #tpu.memory_space<vmem>>, vector<8x32xbf16>
    %cst_52 = arith.constant dense<0.000000e+00> : vector<64x32xf32>
    %141 = tpu.matmul %139, %140, %cst_52 {dimension_numbers = #tpu.dot_dimension_numbers<[1], [0], [0], [1], [0, 0, 1, 1], [], []>} : vector<64x8xbf16>, vector<8x32xbf16>, vector<64x32xf32> -> vector<64x32xf32>
    %142 = arith.addf %114, %141 : vector<64x32xf32>
    %c0_53 = arith.constant 0 : index
    %c0_54 = arith.constant 0 : index
    %143 = vector.load %arg11[%c0_53, %c0_54] : memref<1x32xf32, #tpu.memory_space<vmem>>, vector<1x32xf32>
    %144 = vector.broadcast %143 : vector<1x32xf32> to vector<64x32xf32>
    %145 = arith.addf %142, %144 : vector<64x32xf32>
    %146 = vector.shape_cast %145 : vector<64x32xf32> to vector<4x16x32xf32>
    %c0_55 = arith.constant 0 : index
    %c0_56 = arith.constant 0 : index
    %c0_57 = arith.constant 0 : index
    %147 = vector.load %arg12[%c0_55, %c0_56, %c0_57] : memref<4x16x32xf32, #tpu.memory_space<vmem>>, vector<4x16x32xf32>
    tpu.vector_store %arg12[%c0_55, %c0_56, %c0_57], %146 {strides = array<i32>} : memref<4x16x32xf32, #tpu.memory_space<vmem>>, vector<4x16x32xf32>,
    return
  }
  func.func @transform_0(%arg0: i32) -> (i32, i32, i32) {
    %c0_i32 = arith.constant 0 : i32
    %c0_i32_0 = arith.constant 0 : i32
    %c0_i32_1 = arith.constant 0 : i32
    return %arg0, %c0_i32, %c0_i32_0 : i32, i32, i32
  }
  func.func @transform_1(%arg0: i32) -> (i32, i32, i32) {
    %c0_i32 = arith.constant 0 : i32
    %c0_i32_0 = arith.constant 0 : i32
    %c0_i32_1 = arith.constant 0 : i32
    return %arg0, %c0_i32, %c0_i32_0 : i32, i32, i32
  }
  func.func @transform_2(%arg0: i32) -> (i32, i32, i32) {
    %c0_i32 = arith.constant 0 : i32
    %c0_i32_0 = arith.constant 0 : i32
    %c0_i32_1 = arith.constant 0 : i32
    return %arg0, %c0_i32, %c0_i32_0 : i32, i32, i32
  }
  func.func @transform_3(%arg0: i32) -> (i32, i32) {
    %c0_i32 = arith.constant 0 : i32
    %c0_i32_0 = arith.constant 0 : i32
    %c0_i32_1 = arith.constant 0 : i32
    return %c0_i32, %c0_i32_0 : i32, i32
  }
  func.func @transform_4(%arg0: i32) -> (i32, i32) {
    %c0_i32 = arith.constant 0 : i32
    %c0_i32_0 = arith.constant 0 : i32
    %c0_i32_1 = arith.constant 0 : i32
    return %c0_i32, %c0_i32_0 : i32, i32
  }
  func.func @transform_5(%arg0: i32) -> (i32, i32) {
    %c0_i32 = arith.constant 0 : i32
    %c0_i32_0 = arith.constant 0 : i32
    %c0_i32_1 = arith.constant 0 : i32
    return %c0_i32, %c0_i32_0 : i32, i32
  }
  func.func @transform_6(%arg0: i32) -> (i32, i32) {
    %c0_i32 = arith.constant 0 : i32
    %c0_i32_0 = arith.constant 0 : i32
    %c0_i32_1 = arith.constant 0 : i32
    return %c0_i32, %c0_i32_0 : i32, i32
  }
  func.func @transform_7(%arg0: i32) -> (i32, i32) {
    %c0_i32 = arith.constant 0 : i32
    %c0_i32_0 = arith.constant 0 : i32
    %c0_i32_1 = arith.constant 0 : i32
    return %c0_i32, %c0_i32_0 : i32, i32
  }
  func.func @transform_8(%arg0: i32) -> (i32, i32) {
    %c0_i32 = arith.constant 0 : i32
    %c0_i32_0 = arith.constant 0 : i32
    %c0_i32_1 = arith.constant 0 : i32
    return %c0_i32, %c0_i32_0 : i32, i32
  }
  func.func @transform_9(%arg0: i32) -> (i32, i32) {
    %c0_i32 = arith.constant 0 : i32
    %c0_i32_0 = arith.constant 0 : i32
    %c0_i32_1 = arith.constant 0 : i32
    return %c0_i32, %c0_i32_0 : i32, i32
  }
  func.func @transform_10(%arg0: i32) -> (i32, i32) {
    %c0_i32 = arith.constant 0 : i32
    %c0_i32_0 = arith.constant 0 : i32
    %c0_i32_1 = arith.constant 0 : i32
    return %c0_i32, %c0_i32_0 : i32, i32
  }
  func.func @transform_11(%arg0: i32) -> (i32, i32, i32) {
    %c0_i32 = arith.constant 0 : i32
    %c0_i32_0 = arith.constant 0 : i32
    %c0_i32_1 = arith.constant 0 : i32
    return %arg0, %c0_i32, %c0_i32_0 : i32, i32, i32
  }
}

</mosaic_0001>

<llo_original>
// kernel: tpu_custom_call.1
$region0: #{tpu_custom_call.1}
  #allocation0 [shape = 'u32[]', space=smem, size = 0x4, offset = 0x4, fixed_abs, tag = 'smem constant byte address 0x4 - core index']
  #allocation1 [shape = 'u32[72,128]{1,0:T(1,128)}', space=vmem, size = 0x9000, scoped, tag = 'internal scratch']
  %s0 = inlined_call_operand.hbm [shape: bf16[8,16,32], index: 0, kind: input, shape index: {}]
  %s1 = inlined_call_operand.hbm [shape: bf16[8,16,32], index: 1, kind: input, shape index: {}]
  %s2 = inlined_call_operand.hbm [shape: bf16[8,16,32], index: 2, kind: input, shape index: {}]
  %s3 = inlined_call_operand.hbm [shape: bf16[32,32], index: 3, kind: input, shape index: {}]
  %s4 = inlined_call_operand.vmem [shape: f32[1,32], index: 4, kind: input, shape index: {}]
  %s5 = inlined_call_operand.hbm [shape: bf16[32,32], index: 5, kind: input, shape index: {}]
  %s6 = inlined_call_operand.vmem [shape: f32[1,32], index: 6, kind: input, shape index: {}]
  %s7 = inlined_call_operand.hbm [shape: bf16[32,32], index: 7, kind: input, shape index: {}]
  %s8 = inlined_call_operand.vmem [shape: f32[1,32], index: 8, kind: input, shape index: {}]
  %s9 = inlined_call_operand.hbm [shape: bf16[32,32], index: 9, kind: input, shape index: {}]
  %s10 = inlined_call_operand.vmem [shape: f32[1,32], index: 10, kind: input, shape index: {}]
  %s11 = inlined_call_operand.hbm [shape: f32[8,16,32], index: 11, kind: output, shape index: {}]
  %s12 = sld [smem:[#allocation0]]
  $region105: #{tpu_custom_call.1} parent=0
    _
  %s14 = ssub.s32 1, %s12
  %s15 = scalar_select 0, %s14, %s12
  $region1: #{tpu_custom_call.1} parent=0
    #allocation2 [shape = 'u8[32768]{0}', space=vmem, size = 0x8000, scoped, tag = 'input window, operand 0']
    #allocation3 [shape = 's32[2]{0}', space=sflag, size = 0x8, scoped, tag = 'scoped memory for tpu_custom_call.1']
    #allocation4 [shape = 's32[2]{0}', space=sflag, size = 0x8, scoped, tag = 'scoped memory for tpu_custom_call.1']
    #allocation5 [shape = 'u8[32768]{0}', space=vmem, size = 0x8000, scoped, tag = 'input window, operand 1']
    #allocation6 [shape = 's32[2]{0}', space=sflag, size = 0x8, scoped, tag = 'scoped memory for tpu_custom_call.1']
    #allocation7 [shape = 'u8[32768]{0}', space=vmem, size = 0x8000, scoped, tag = 'input window, operand 2']
    #allocation8 [shape = 'u8[8192]{0}', space=vmem, size = 0x2000, scoped, tag = 'input window, operand 3, single buffered']
    #allocation9 [shape = 's32[1]{0}', space=sflag, size = 0x4, scoped, tag = 'scoped memory for tpu_custom_call.1']
    #allocation10 [shape = 'u8[8192]{0}', space=vmem, size = 0x2000, scoped, tag = 'input window, operand 5, single buffered']
    #allocation11 [shape = 'u8[8192]{0}', space=vmem, size = 0x2000, scoped, tag = 'input window, operand 7, single buffered']
    #allocation12 [shape = 's32[1]{0}', space=sflag, size = 0x4, scoped, tag = 'scoped memory for tpu_custom_call.1']
    #allocation13 [shape = 'u8[8192]{0}', space=vmem, size = 0x2000, scoped, tag = 'input window, operand 9, single buffered']
    #allocation14 [shape = 'u8[65536]{0}', space=vmem, size = 0x10000, scoped, tag = 'output window, operand 0']
    %16 = vsyncpa [#allocation3], 0
    %s17 = scalar_lea.sflag [#allocation3], 1
    %18 = vsyncpa %s17, 0
    %19 = vsyncpa [#allocation6], 0
    %s20 = scalar_lea.sflag [#allocation6], 1
    %21 = vsyncpa %s20, 0
    %22 = vsyncpa [#allocation9], 0
    %23 = vsyncpa [#allocation12], 0
    %24 = vsyncpa [#allocation4], 0
    %s25 = scalar_lea.sflag [#allocation4], 1
    %26 = vsyncpa %s25, 0
    loop: start=0, step=1, limit=4
    $region2: #{tpu_custom_call.1} parent=1 // loop_pre_header
      _
    $region3: #{tpu_custom_call.1} parent=1 // loop_header
      %s28 = sphi 0, %s32
      %p29 = scmp.ge.s32.totalorder %s28, 4
      %s38 = sphi 0, %s40
      %s41 = sphi 0, %s38
      %s42 = sphi 0, %s41
      %s58 = sphi 0, %s42
      %s64 = sphi 0, %s66
      %s67 = sphi 0, %s64
      %s68 = sphi 0, %s67
      %s84 = sphi 0, %s68
      %s90 = sphi 0, %s92
      %s93 = sphi 0, %s90
      %s94 = sphi 0, %s93
      %s110 = sphi 0, %s94
      %s114 = sphi 0, %s114
      %s116 = sphi 0, %s114
      %s117 = sphi 0, %s116
      %s131 = sphi 0, %s117
      %s135 = sphi 0, %s135
      %s137 = sphi 0, %s135
      %s138 = sphi 0, %s137
      %s152 = sphi 0, %s138
      %s156 = sphi 0, %s156
      %s158 = sphi 0, %s156
      %s159 = sphi 0, %s158
      %s173 = sphi 0, %s159
      %s177 = sphi 0, %s177
      %s179 = sphi 0, %s177
      %s180 = sphi 0, %s179
      %s194 = sphi 0, %s180
      %s198 = sphi 0, %s198
      %s200 = sphi 0, %s198
      %s201 = sphi 0, %s200
      %s215 = sphi 0, %s201
      %s219 = sphi 0, %s219
      %s221 = sphi 0, %s219
      %s222 = sphi 0, %s221
      %s236 = sphi 0, %s222
      %s240 = sphi 0, %s240
      %s242 = sphi 0, %s240
      %s243 = sphi 0, %s242
      %s257 = sphi 0, %s243
      %s261 = sphi 0, %s261
      %s263 = sphi 0, %s261
      %s264 = sphi 0, %s263
      %s278 = sphi 0, %s264
      %s284 = sphi 0, %s286
      %s287 = sphi 0, %s284
      %s288 = sphi 0, %s287
      %s304 = sphi 0, %s288
    $region4: #{tpu_custom_call.1} parent=1 // loop_header_branch
      %31 = sbr.rel (%p29) target = $region8
    $region5: #{tpu_custom_call.1} parent=1 // loop_body
      %s33 = ssub.s32 %s28, 1
      %s34 = ssub.s32 %s28, 2
      %s35 = sadd.s32 %s28, 1
      %s36 = ssub.s32 %s28, %s35
      %p37 = scmp.eq.s32.totalorder %s36, 0
      %s39 = sadd.s32 %s38, 1
      %s40 = scalar_select %p37, %s38, %s39
      %p43 = pneg %p37
      %p44 = scmp.eq.s32.totalorder %s28, 1
      %p45 = por %p43, %p44
      %p46 = scmp.ne.s32.totalorder %s38, %s41
      %p47 = scmp.eq.s32.totalorder %s28, 0
      %p48 = por %p46, %p47
      %p49 = scmp.ne.s32.totalorder %s38, %s41
      %p50 = scmp.eq.s32.totalorder %s33, 1
      %p51 = por %p49, %p50
      %p52 = scmp.ne.s32.totalorder %s41, %s42
      %p53 = scmp.eq.s32.totalorder %s33, 0
      %p54 = por %p52, %p53
      %p55 = scmp.ne.s32.totalorder %s41, %s42
      %p56 = scmp.eq.s32.totalorder %s34, 1
      %p57 = por %p55, %p56
      %p59 = scmp.ne.s32.totalorder %s42, %s58
      %p60 = scmp.eq.s32.totalorder %s34, 0
      %p61 = por %p59, %p60
      %s62 = ssub.s32 %s28, %s35
      %p63 = scmp.eq.s32.totalorder %s62, 0
      %s65 = sadd.s32 %s64, 1
      %s66 = scalar_select %p63, %s64, %s65
      %p69 = pneg %p63
      %p70 = scmp.eq.s32.totalorder %s28, 1
      %p71 = por %p69, %p70
      %p72 = scmp.ne.s32.totalorder %s64, %s67
      %p73 = scmp.eq.s32.totalorder %s28, 0
      %p74 = por %p72, %p73
      %p75 = scmp.ne.s32.totalorder %s64, %s67
      %p76 = scmp.eq.s32.totalorder %s33, 1
      %p77 = por %p75, %p76
      %p78 = scmp.ne.s32.totalorder %s67, %s68
      %p79 = scmp.eq.s32.totalorder %s33, 0
      %p80 = por %p78, %p79
      %p81 = scmp.ne.s32.totalorder %s67, %s68
      %p82 = scmp.eq.s32.totalorder %s34, 1
      %p83 = por %p81, %p82
      %p85 = scmp.ne.s32.totalorder %s68, %s84
      %p86 = scmp.eq.s32.totalorder %s34, 0
      %p87 = por %p85, %p86
      %s88 = ssub.s32 %s28, %s35
      %p89 = scmp.eq.s32.totalorder %s88, 0
      %s91 = sadd.s32 %s90, 1
      %s92 = scalar_select %p89, %s90, %s91
      %p95 = pneg %p89
      %p96 = scmp.eq.s32.totalorder %s28, 1
      %p97 = por %p95, %p96
      %p98 = scmp.ne.s32.totalorder %s90, %s93
      %p99 = scmp.eq.s32.totalorder %s28, 0
      %p100 = por %p98, %p99
      %p101 = scmp.ne.s32.totalorder %s90, %s93
      %p102 = scmp.eq.s32.totalorder %s33, 1
      %p103 = por %p101, %p102
      %p104 = scmp.ne.s32.totalorder %s93, %s94
      %p105 = scmp.eq.s32.totalorder %s33, 0
      %p106 = por %p104, %p105
      %p107 = scmp.ne.s32.totalorder %s93, %s94
      %p108 = scmp.eq.s32.totalorder %s34, 1
      %p109 = por %p107, %p108
      %p111 = scmp.ne.s32.totalorder %s94, %s110
      %p112 = scmp.eq.s32.totalorder %s34, 0
      %p113 = por %p111, %p112
      %s115 = sadd.s32 %s114, 1
      %p118 = scmp.eq.s32.totalorder %s28, 1
      %p119 = scmp.ne.s32.totalorder %s114, %s116
      %p120 = scmp.eq.s32.totalorder %s28, 0
      %p121 = por %p119, %p120
      %p122 = scmp.ne.s32.totalorder %s114, %s116
      %p123 = scmp.eq.s32.totalorder %s33, 1
      %p124 = por %p122, %p123
      %p125 = scmp.ne.s32.totalorder %s116, %s117
      %p126 = scmp.eq.s32.totalorder %s33, 0
      %p127 = por %p125, %p126
      %p128 = scmp.ne.s32.totalorder %s116, %s117
      %p129 = scmp.eq.s32.totalorder %s34, 1
      %p130 = por %p128, %p129
      %p132 = scmp.ne.s32.totalorder %s117, %s131
      %p133 = scmp.eq.s32.totalorder %s34, 0
      %p134 = por %p132, %p133
      %s136 = sadd.s32 %s135, 1
      %p139 = scmp.eq.s32.totalorder %s28, 1
      %p140 = scmp.ne.s32.totalorder %s135, %s137
      %p141 = scmp.eq.s32.totalorder %s28, 0
      %p142 = por %p140, %p141
      %p143 = scmp.ne.s32.totalorder %s135, %s137
      %p144 = scmp.eq.s32.totalorder %s33, 1
      %p145 = por %p143, %p144
      %p146 = scmp.ne.s32.totalorder %s137, %s138
      %p147 = scmp.eq.s32.totalorder %s33, 0
      %p148 = por %p146, %p147
      %p149 = scmp.ne.s32.totalorder %s137, %s138
      %p150 = scmp.eq.s32.totalorder %s34, 1
      %p151 = por %p149, %p150
      %p153 = scmp.ne.s32.totalorder %s138, %s152
      %p154 = scmp.eq.s32.totalorder %s34, 0
      %p155 = por %p153, %p154
      %s157 = sadd.s32 %s156, 1
      %p160 = scmp.eq.s32.totalorder %s28, 1
      %p161 = scmp.ne.s32.totalorder %s156, %s158
      %p162 = scmp.eq.s32.totalorder %s28, 0
      %p163 = por %p161, %p162
      %p164 = scmp.ne.s32.totalorder %s156, %s158
      %p165 = scmp.eq.s32.totalorder %s33, 1
      %p166 = por %p164, %p165
      %p167 = scmp.ne.s32.totalorder %s158, %s159
      %p168 = scmp.eq.s32.totalorder %s33, 0
      %p169 = por %p167, %p168
      %p170 = scmp.ne.s32.totalorder %s158, %s159
      %p171 = scmp.eq.s32.totalorder %s34, 1
      %p172 = por %p170, %p171
      %p174 = scmp.ne.s32.totalorder %s159, %s173
      %p175 = scmp.eq.s32.totalorder %s34, 0
      %p176 = por %p174, %p175
      %s178 = sadd.s32 %s177, 1
      %p181 = scmp.eq.s32.totalorder %s28, 1
      %p182 = scmp.ne.s32.totalorder %s177, %s179
      %p183 = scmp.eq.s32.totalorder %s28, 0
      %p184 = por %p182, %p183
      %p185 = scmp.ne.s32.totalorder %s177, %s179
      %p186 = scmp.eq.s32.totalorder %s33, 1
      %p187 = por %p185, %p186
      %p188 = scmp.ne.s32.totalorder %s179, %s180
      %p189 = scmp.eq.s32.totalorder %s33, 0
      %p190 = por %p188, %p189
      %p191 = scmp.ne.s32.totalorder %s179, %s180
      %p192 = scmp.eq.s32.totalorder %s34, 1
      %p193 = por %p191, %p192
      %p195 = scmp.ne.s32.totalorder %s180, %s194
      %p196 = scmp.eq.s32.totalorder %s34, 0
      %p197 = por %p195, %p196
      %s199 = sadd.s32 %s198, 1
      %p202 = scmp.eq.s32.totalorder %s28, 1
      %p203 = scmp.ne.s32.totalorder %s198, %s200
      %p204 = scmp.eq.s32.totalorder %s28, 0
      %p205 = por %p203, %p204
      %p206 = scmp.ne.s32.totalorder %s198, %s200
      %p207 = scmp.eq.s32.totalorder %s33, 1
      %p208 = por %p206, %p207
      %p209 = scmp.ne.s32.totalorder %s200, %s201
      %p210 = scmp.eq.s32.totalorder %s33, 0
      %p211 = por %p209, %p210
      %p212 = scmp.ne.s32.totalorder %s200, %s201
      %p213 = scmp.eq.s32.totalorder %s34, 1
      %p214 = por %p212, %p213
      %p216 = scmp.ne.s32.totalorder %s201, %s215
      %p217 = scmp.eq.s32.totalorder %s34, 0
      %p218 = por %p216, %p217
      %s220 = sadd.s32 %s219, 1
      %p223 = scmp.eq.s32.totalorder %s28, 1
      %p224 = scmp.ne.s32.totalorder %s219, %s221
      %p225 = scmp.eq.s32.totalorder %s28, 0
      %p226 = por %p224, %p225
      %p227 = scmp.ne.s32.totalorder %s219, %s221
      %p228 = scmp.eq.s32.totalorder %s33, 1
      %p229 = por %p227, %p228
      %p230 = scmp.ne.s32.totalorder %s221, %s222
      %p231 = scmp.eq.s32.totalorder %s33, 0
      %p232 = por %p230, %p231
      %p233 = scmp.ne.s32.totalorder %s221, %s222
      %p234 = scmp.eq.s32.totalorder %s34, 1
      %p235 = por %p233, %p234
      %p237 = scmp.ne.s32.totalorder %s222, %s236
      %p238 = scmp.eq.s32.totalorder %s34, 0
      %p239 = por %p237, %p238
      %s241 = sadd.s32 %s240, 1
      %p244 = scmp.eq.s32.totalorder %s28, 1
      %p245 = scmp.ne.s32.totalorder %s240, %s242
      %p246 = scmp.eq.s32.totalorder %s28, 0
      %p247 = por %p245, %p246
      %p248 = scmp.ne.s32.totalorder %s240, %s242
      %p249 = scmp.eq.s32.totalorder %s33, 1
      %p250 = por %p248, %p249
      %p251 = scmp.ne.s32.totalorder %s242, %s243
      %p252 = scmp.eq.s32.totalorder %s33, 0
      %p253 = por %p251, %p252
      %p254 = scmp.ne.s32.totalorder %s242, %s243
      %p255 = scmp.eq.s32.totalorder %s34, 1
      %p256 = por %p254, %p255
      %p258 = scmp.ne.s32.totalorder %s243, %s257
      %p259 = scmp.eq.s32.totalorder %s34, 0
      %p260 = por %p258, %p259
      %s262 = sadd.s32 %s261, 1
      %p265 = scmp.eq.s32.totalorder %s28, 1
      %p266 = scmp.ne.s32.totalorder %s261, %s263
      %p267 = scmp.eq.s32.totalorder %s28, 0
      %p268 = por %p266, %p267
      %p269 = scmp.ne.s32.totalorder %s261, %s263
      %p270 = scmp.eq.s32.totalorder %s33, 1
      %p271 = por %p269, %p270
      %p272 = scmp.ne.s32.totalorder %s263, %s264
      %p273 = scmp.eq.s32.totalorder %s33, 0
      %p274 = por %p272, %p273
      %p275 = scmp.ne.s32.totalorder %s263, %s264
      %p276 = scmp.eq.s32.totalorder %s34, 1
      %p277 = por %p275, %p276
      %p279 = scmp.ne.s32.totalorder %s264, %s278
      %p280 = scmp.eq.s32.totalorder %s34, 0
      %p281 = por %p279, %p280
      %s282 = ssub.s32 %s28, %s35
      %p283 = scmp.eq.s32.totalorder %s282, 0
      %s285 = sadd.s32 %s284, 1
      %s286 = scalar_select %p283, %s284, %s285
      %p289 = pneg %p283
      %p290 = scmp.eq.s32.totalorder %s28, 1
      %p291 = por %p289, %p290
      %p292 = scmp.ne.s32.totalorder %s284, %s287
      %p293 = scmp.eq.s32.totalorder %s28, 0
      %p294 = por %p292, %p293
      %p295 = scmp.ne.s32.totalorder %s284, %s287
      %p296 = scmp.eq.s32.totalorder %s33, 1
      %p297 = por %p295, %p296
      %p298 = scmp.ne.s32.totalorder %s287, %s288
      %p299 = scmp.eq.s32.totalorder %s33, 0
      %p300 = por %p298, %p299
      %p301 = scmp.ne.s32.totalorder %s287, %s288
      %p302 = scmp.eq.s32.totalorder %s34, 1
      %p303 = por %p301, %p302
      %p305 = scmp.ne.s32.totalorder %s288, %s304
      %p306 = scmp.eq.s32.totalorder %s34, 0
      %p307 = por %p305, %p306
      %p308 = scmp.le.s32.totalorder 1, %s28
      %p309 = scmp.lt.s32.totalorder %s28, 3
      %p310 = pnand %p308, %p309
      %p311 = pneg %p310
      // Predicated region
      $region9: #{tpu_custom_call.1} parent=5 // pred_check
        _
      $region10: #{tpu_custom_call.1} parent=5 // pred_check_branch
        %313 = sbr.rel (%p310) target = $region12
      $region11: #{tpu_custom_call.1} parent=5 // pred_region
        %s314 = ssub.s32 %s28, 1
        // Predicated region
        $region13: #{tpu_custom_call.1} parent=11 // pred_check
          %p315 = pneg %p127
        $region14: #{tpu_custom_call.1} parent=11 // pred_check_branch
          %317 = sbr.rel (%p315) target = $region16
        $region15: #{tpu_custom_call.1} parent=11 // pred_region
          %319 = vsyncadd [#allocation9], 0
          %s320 = sshll.u32 %s3, 4
          %s321 = int_to_ptr.hbm [resolvable:$true] %s320
          %s322 = sshll.u32 [#allocation8], 4
          %s323 = int_to_ptr.vmem [resolvable:$true] %s322
          %328 = dma.hbm_to_vmem [thread:$0]  %s321, 256, %s323, [#allocation9], 64, 64, 4
        $region16: #{tpu_custom_call.1} parent=11 // pred_fallthru
          _
        // Predicated region
        $region17: #{tpu_custom_call.1} parent=11 // pred_check
          %p329 = pneg %p148
        $region18: #{tpu_custom_call.1} parent=11 // pred_check_branch
          %331 = sbr.rel (%p329) target = $region20
        $region19: #{tpu_custom_call.1} parent=11 // pred_region
          _
        $region20: #{tpu_custom_call.1} parent=11 // pred_fallthru
          _
        // Predicated region
        $region21: #{tpu_custom_call.1} parent=11 // pred_check
          %p332 = pneg %p169
        $region22: #{tpu_custom_call.1} parent=11 // pred_check_branch
          %334 = sbr.rel (%p332) target = $region24
        $region23: #{tpu_custom_call.1} parent=11 // pred_region
          %336 = vsyncadd [#allocation9], 0
          %s337 = sshll.u32 %s5, 4
          %s338 = int_to_ptr.hbm [resolvable:$true] %s337
          %s339 = sshll.u32 [#allocation10], 4
          %s340 = int_to_ptr.vmem [resolvable:$true] %s339
          %345 = dma.hbm_to_vmem [thread:$0]  %s338, 256, %s340, [#allocation9], 64, 64, 4
        $region24: #{tpu_custom_call.1} parent=11 // pred_fallthru
          _
        // Predicated region
        $region25: #{tpu_custom_call.1} parent=11 // pred_check
          %p346 = pneg %p190
        $region26: #{tpu_custom_call.1} parent=11 // pred_check_branch
          %348 = sbr.rel (%p346) target = $region28
        $region27: #{tpu_custom_call.1} parent=11 // pred_region
          _
        $region28: #{tpu_custom_call.1} parent=11 // pred_fallthru
          _
        // Predicated region
        $region29: #{tpu_custom_call.1} parent=11 // pred_check
          %p349 = pneg %p211
        $region30: #{tpu_custom_call.1} parent=11 // pred_check_branch
          %351 = sbr.rel (%p349) target = $region32
        $region31: #{tpu_custom_call.1} parent=11 // pred_region
          %353 = vsyncadd [#allocation12], 0
          %s354 = sshll.u32 %s7, 4
          %s355 = int_to_ptr.hbm [resolvable:$true] %s354
          %s356 = sshll.u32 [#allocation11], 4
          %s357 = int_to_ptr.vmem [resolvable:$true] %s356
          %362 = dma.hbm_to_vmem [thread:$0]  %s355, 256, %s357, [#allocation12], 64, 64, 4
        $region32: #{tpu_custom_call.1} parent=11 // pred_fallthru
          _
        // Predicated region
        $region33: #{tpu_custom_call.1} parent=11 // pred_check
          %p363 = pneg %p232
        $region34: #{tpu_custom_call.1} parent=11 // pred_check_branch
          %365 = sbr.rel (%p363) target = $region36
        $region35: #{tpu_custom_call.1} parent=11 // pred_region
          _
        $region36: #{tpu_custom_call.1} parent=11 // pred_fallthru
          _
        // Predicated region
        $region37: #{tpu_custom_call.1} parent=11 // pred_check
          %p366 = pneg %p253
        $region38: #{tpu_custom_call.1} parent=11 // pred_check_branch
          %368 = sbr.rel (%p366) target = $region40
        $region39: #{tpu_custom_call.1} parent=11 // pred_region
          %370 = vsyncadd [#allocation12], 0
          %s371 = sshll.u32 %s9, 4
          %s372 = int_to_ptr.hbm [resolvable:$true] %s371
          %s373 = sshll.u32 [#allocation13], 4
          %s374 = int_to_ptr.vmem [resolvable:$true] %s373
          %379 = dma.hbm_to_vmem [thread:$0]  %s372, 256, %s374, [#allocation12], 64, 64, 4
        $region40: #{tpu_custom_call.1} parent=11 // pred_fallthru
          _
        // Predicated region
        $region41: #{tpu_custom_call.1} parent=11 // pred_check
          %p380 = pneg %p274
        $region42: #{tpu_custom_call.1} parent=11 // pred_check_branch
          %382 = sbr.rel (%p380) target = $region44
        $region43: #{tpu_custom_call.1} parent=11 // pred_region
          _
        $region44: #{tpu_custom_call.1} parent=11 // pred_fallthru
          _
      $region12: #{tpu_custom_call.1} parent=5 // pred_fallthru
        _
      %p383 = scmp.lt.s32.totalorder %s28, 2
      // Predicated region
      $region45: #{tpu_custom_call.1} parent=5 // pred_check
        %p384 = pneg %p383
      $region46: #{tpu_custom_call.1} parent=5 // pred_check_branch
        %386 = sbr.rel (%p384) target = $region48
      $region47: #{tpu_custom_call.1} parent=5 // pred_region
        // Predicated region
        $region49: #{tpu_custom_call.1} parent=47 // pred_check
          %p387 = pneg %p48
        $region50: #{tpu_custom_call.1} parent=47 // pred_check_branch
          %389 = sbr.rel (%p387) target = $region52
        $region51: #{tpu_custom_call.1} parent=47 // pred_region
          %s390 = sand.u32 %s38, 1
          %s391 = scalar_lea.sflag [#allocation3], %s390
          %s392 = sand.u32 %s38, 1
          %s393 = smul.addr %s392, 32
          %s394 = scalar_lea.vmem [#allocation2], %s393
          %s395 = smul.u32 4, %s28
          %397 = vsyncadd %s391, 0
          %s398 = smul.addr %s395, 2
          %s399 = smul.addr %s398, 4
          %s400 = scalar_lea.hbm %s0, %s399
          %s401 = sshll.u32 %s400, 4
          %s402 = int_to_ptr.hbm [resolvable:$true] %s401
          %s403 = sshll.u32 %s394, 4
          %s404 = int_to_ptr.vmem [resolvable:$true] %s403
          %409 = dma.hbm_to_vmem [thread:$0]  %s402, 512, %s404, %s391, 64, 64, 4
        $region52: #{tpu_custom_call.1} parent=47 // pred_fallthru
          _
        // Predicated region
        $region53: #{tpu_custom_call.1} parent=47 // pred_check
          %p410 = pneg %p74
        $region54: #{tpu_custom_call.1} parent=47 // pred_check_branch
          %412 = sbr.rel (%p410) target = $region56
        $region55: #{tpu_custom_call.1} parent=47 // pred_region
          %s413 = sand.u32 %s28, 1
          %s414 = scalar_lea.sflag [#allocation6], %s413
          %s415 = sand.u32 %s64, 1
          %s416 = smul.addr %s415, 32
          %s417 = scalar_lea.vmem [#allocation5], %s416
          %s418 = smul.u32 4, %s28
          %420 = vsyncadd %s414, 0
          %s421 = smul.addr %s418, 2
          %s422 = smul.addr %s421, 4
          %s423 = scalar_lea.hbm %s1, %s422
          %s424 = sshll.u32 %s423, 4
          %s425 = int_to_ptr.hbm [resolvable:$true] %s424
          %s426 = sshll.u32 %s417, 4
          %s427 = int_to_ptr.vmem [resolvable:$true] %s426
          %432 = dma.hbm_to_vmem [thread:$0]  %s425, 512, %s427, %s414, 64, 64, 4
        $region56: #{tpu_custom_call.1} parent=47 // pred_fallthru
          _
        // Predicated region
        $region57: #{tpu_custom_call.1} parent=47 // pred_check
          %p433 = pneg %p100
        $region58: #{tpu_custom_call.1} parent=47 // pred_check_branch
          %435 = sbr.rel (%p433) target = $region60
        $region59: #{tpu_custom_call.1} parent=47 // pred_region
          %s436 = sand.u32 %s28, 1
          %s437 = scalar_lea.sflag [#allocation6], %s436
          %s438 = sand.u32 %s90, 1
          %s439 = smul.addr %s438, 32
          %s440 = scalar_lea.vmem [#allocation7], %s439
          %s441 = smul.u32 4, %s28
          %443 = vsyncadd %s437, 0
          %s444 = smul.addr %s441, 2
          %s445 = smul.addr %s444, 4
          %s446 = scalar_lea.hbm %s2, %s445
          %s447 = sshll.u32 %s446, 4
          %s448 = int_to_ptr.hbm [resolvable:$true] %s447
          %s449 = sshll.u32 %s440, 4
          %s450 = int_to_ptr.vmem [resolvable:$true] %s449
          %455 = dma.hbm_to_vmem [thread:$0]  %s448, 512, %s450, %s437, 64, 64, 4
        $region60: #{tpu_custom_call.1} parent=47 // pred_fallthru
          _
      $region48: #{tpu_custom_call.1} parent=5 // pred_fallthru
        _
      %p456 = scmp.le.s32.totalorder 1, %s28
      %p457 = scmp.lt.s32.totalorder %s28, 3
      %p458 = pnand %p456, %p457
      %p459 = pneg %p458
      // Predicated region
      $region61: #{tpu_custom_call.1} parent=5 // pred_check
        _
      $region62: #{tpu_custom_call.1} parent=5 // pred_check_branch
        %461 = sbr.rel (%p458) target = $region64
      $region63: #{tpu_custom_call.1} parent=5 // pred_region
        %s462 = ssub.s32 %s28, 1
        %s463 = sand.u32 %s41, 1
        %s464 = scalar_lea.sflag [#allocation3], %s463
        %s465 = sand.u32 %s41, 1
        %s466 = smul.addr %s465, 32
        %s467 = scalar_lea.vmem [#allocation2], %s466
        // Predicated region
        $region65: #{tpu_custom_call.1} parent=63 // pred_check
          %p468 = pneg %p54
        $region66: #{tpu_custom_call.1} parent=63 // pred_check_branch
          %470 = sbr.rel (%p468) target = $region68
        $region67: #{tpu_custom_call.1} parent=63 // pred_region
          %472 = dma.done %s464, 512
        $region68: #{tpu_custom_call.1} parent=63 // pred_fallthru
          _
        %s473 = sand.u32 %s33, 1
        %s474 = scalar_lea.sflag [#allocation6], %s473
        %s475 = sand.u32 %s67, 1
        %s476 = smul.addr %s475, 32
        %s477 = scalar_lea.vmem [#allocation5], %s476
        // Predicated region
        $region69: #{tpu_custom_call.1} parent=63 // pred_check
          %p478 = pneg %p80
        $region70: #{tpu_custom_call.1} parent=63 // pred_check_branch
          %480 = sbr.rel (%p478) target = $region72
        $region71: #{tpu_custom_call.1} parent=63 // pred_region
          %482 = dma.done %s474, 512
        $region72: #{tpu_custom_call.1} parent=63 // pred_fallthru
          _
        %s483 = sand.u32 %s33, 1
        %s484 = scalar_lea.sflag [#allocation6], %s483
        %s485 = sand.u32 %s93, 1
        %s486 = smul.addr %s485, 32
        %s487 = scalar_lea.vmem [#allocation7], %s486
        // Predicated region
        $region73: #{tpu_custom_call.1} parent=63 // pred_check
          %p488 = pneg %p106
        $region74: #{tpu_custom_call.1} parent=63 // pred_check_branch
          %490 = sbr.rel (%p488) target = $region76
        $region75: #{tpu_custom_call.1} parent=63 // pred_region
          %492 = dma.done %s484, 512
        $region76: #{tpu_custom_call.1} parent=63 // pred_fallthru
          _
        // Predicated region
        $region77: #{tpu_custom_call.1} parent=63 // pred_check
          %p493 = pneg %p127
        $region78: #{tpu_custom_call.1} parent=63 // pred_check_branch
          %495 = sbr.rel (%p493) target = $region80
        $region79: #{tpu_custom_call.1} parent=63 // pred_region
          %497 = dma.done [#allocation9], 256
        $region80: #{tpu_custom_call.1} parent=63 // pred_fallthru
          _
        // Predicated region
        $region81: #{tpu_custom_call.1} parent=63 // pred_check
          %p498 = pneg %p169
        $region82: #{tpu_custom_call.1} parent=63 // pred_check_branch
          %500 = sbr.rel (%p498) target = $region84
        $region83: #{tpu_custom_call.1} parent=63 // pred_region
          %502 = dma.done [#allocation9], 256
        $region84: #{tpu_custom_call.1} parent=63 // pred_fallthru
          _
        // Predicated region
        $region85: #{tpu_custom_call.1} parent=63 // pred_check
          %p503 = pneg %p211
        $region86: #{tpu_custom_call.1} parent=63 // pred_check_branch
          %505 = sbr.rel (%p503) target = $region88
        $region87: #{tpu_custom_call.1} parent=63 // pred_region
          %507 = dma.done [#allocation12], 256
        $region88: #{tpu_custom_call.1} parent=63 // pred_fallthru
          _
        // Predicated region
        $region89: #{tpu_custom_call.1} parent=63 // pred_check
          %p508 = pneg %p253
        $region90: #{tpu_custom_call.1} parent=63 // pred_check_branch
          %510 = sbr.rel (%p508) target = $region92
        $region91: #{tpu_custom_call.1} parent=63 // pred_region
          %512 = dma.done [#allocation12], 256
        $region92: #{tpu_custom_call.1} parent=63 // pred_fallthru
          _
        %s513 = sand.u32 %s41, 1
        %s514 = scalar_lea.sflag [#allocation3], %s513
        %s515 = sand.u32 %s41, 1
        %s516 = smul.addr %s515, 32
        %s517 = scalar_lea.vmem [#allocation2], %s516
        %p518 = pneg %p54
        %p519 = pneg %p51
        %s520 = sand.u32 %s33, 1
        %s521 = scalar_lea.sflag [#allocation6], %s520
        %s522 = sand.u32 %s67, 1
        %s523 = smul.addr %s522, 32
        %s524 = scalar_lea.vmem [#allocation5], %s523
        %p525 = pneg %p80
        %p526 = pneg %p77
        %s527 = sand.u32 %s33, 1
        %s528 = scalar_lea.sflag [#allocation6], %s527
        %s529 = sand.u32 %s93, 1
        %s530 = smul.addr %s529, 32
        %s531 = scalar_lea.vmem [#allocation7], %s530
        %p532 = pneg %p106
        %p533 = pneg %p103
        %p534 = pneg %p127
        %p535 = pneg %p124
        %p536 = pneg %p148
        %p537 = pneg %p145
        %p538 = pneg %p169
        %p539 = pneg %p166
        %p540 = pneg %p190
        %p541 = pneg %p187
        %p542 = pneg %p211
        %p543 = pneg %p208
        %p544 = pneg %p232
        %p545 = pneg %p229
        %p546 = pneg %p253
        %p547 = pneg %p250
        %p548 = pneg %p274
        %p549 = pneg %p271
        %p550 = pneg %p300
        %p551 = pneg %p297
        %s552 = sand.u32 %s287, 1
        %s553 = scalar_lea.sflag [#allocation4], %s552
        %s554 = sand.u32 %s287, 1
        %s555 = smul.addr %s554, 64
        %s556 = scalar_lea.vmem [#allocation14], %s555
        %s557 = smul.u32 4, %s33
        %s558 = smul.u32 4, %s33
        %s559 = smul.u32 4, %s33
        %s560 = smul.u32 4, %s33
        %v562 = vld [vmem:[%s467] sm:$0xf]
        %v563 = vld [vmem:[%s467 + $0x4] sm:$0xf]
        %v564 = vld [vmem:[%s467 + $0x8] sm:$0xf]
        %v565 = vld [vmem:[%s467 + $0xc] sm:$0xf]
        %v566 = vld [vmem:[%s467 + $0x10] sm:$0xf]
        %v567 = vld [vmem:[%s467 + $0x14] sm:$0xf]
        %v568 = vld [vmem:[%s467 + $0x18] sm:$0xf]
        %v569 = vld [vmem:[%s467 + $0x1c] sm:$0xf]
        %v570 = vld [vmem:[%s477] sm:$0xf]
        %v571 = vld [vmem:[%s477 + $0x4] sm:$0xf]
        %v572 = vld [vmem:[%s477 + $0x8] sm:$0xf]
        %v573 = vld [vmem:[%s477 + $0xc] sm:$0xf]
        %v574 = vld [vmem:[%s477 + $0x10] sm:$0xf]
        %v575 = vld [vmem:[%s477 + $0x14] sm:$0xf]
        %v576 = vld [vmem:[%s477 + $0x18] sm:$0xf]
        %v577 = vld [vmem:[%s477 + $0x1c] sm:$0xf]
        %v578 = vld [vmem:[%s487] sm:$0xf]
        %v579 = vld [vmem:[%s487 + $0x4] sm:$0xf]
        %v580 = vld [vmem:[%s487 + $0x8] sm:$0xf]
        %v581 = vld [vmem:[%s487 + $0xc] sm:$0xf]
        %v582 = vld [vmem:[%s487 + $0x10] sm:$0xf]
        %v583 = vld [vmem:[%s487 + $0x14] sm:$0xf]
        %v584 = vld [vmem:[%s487 + $0x18] sm:$0xf]
        %v585 = vld [vmem:[%s487 + $0x1c] sm:$0xf]
        %v586 = vld [vmem:[#allocation8] sm:$0xf]
        %v587 = vld [vmem:[#allocation8 + $0x4] sm:$0xf]
        %v588 = vld [vmem:[#allocation8 + $0x8] sm:$0xf]
        %v589 = vld [vmem:[#allocation8 + $0xc] sm:$0xf]
        %v590 = vld [vmem:[%s4] sm:$0x1]
        %v592 = vperm.slane %v590, 0
        %v602 = vunpack.c.l.b16 %v562
        %v603 = vunpack.c.l.b16 %v563
        %v604 = vunpack.c.l.b16 %v564
        %v605 = vunpack.c.l.b16 %v565
        %v606 = vunpack.c.l.b16 %v566
        %v607 = vunpack.c.l.b16 %v567
        %v608 = vunpack.c.l.b16 %v568
        %v609 = vunpack.c.l.b16 %v569
        %v610 = vpack.c.b16 %v603, %v602
        %v611 = vpack.c.b16 %v605, %v604
        %v612 = vpack.c.b16 %v607, %v606
        %v613 = vpack.c.b16 %v609, %v608
        %v618 = vunpack.c.l.b16 %v586
        %v619 = vunpack.c.l.b16 %v587
        %v620 = vunpack.c.l.b16 %v588
        %v621 = vunpack.c.l.b16 %v589
        %v622 = vpack.c.b16 %v619, %v618
        %v623 = vpack.c.b16 %v621, %v620
        %vm626 = vcmask 261120
        %v628 = vsel %vm626, %v610, 0
        %v631 = vsel %vm626, %v611, 0
        %v634 = vsel %vm626, %v612, 0
        %v637 = vsel %vm626, %v613, 0
        %639 = vmatpush.bf16.msra.mxu0 0
        %640 = vmatpush.bf16.msra.mxu0 0
        %641 = vmatpush.bf16.msra.mxu0 0
        %642 = vmatpush.bf16.msra.mxu0 0
        %643 = vmatpush.bf16.msra.mxu0 0
        %644 = vmatpush.bf16.msra.mxu0 0
        %645 = vmatpush.bf16.msra.mxu0 %v623
        %646 = vmatpush.bf16.msra.mxu0 %v622
        %647 = vmatmul.bf16.gmra.mxu0 %v628
        %v648 = vpop.f32.mrf.mxu0
        %v649 = vadd.f32 %v592, %v648
        %v650 = vpop.f32.mrf.mxu0
        %v651 = vadd.f32 %v592, %v650
        %652 = vmatmul.bf16.gmra.mxu0 %v631
        %v653 = vpop.f32.mrf.mxu0
        %v654 = vadd.f32 %v592, %v653
        %v655 = vpop.f32.mrf.mxu0
        %v656 = vadd.f32 %v592, %v655
        %657 = vmatmul.bf16.gmra.mxu0 %v634
        %v658 = vpop.f32.mrf.mxu0
        %v659 = vadd.f32 %v592, %v658
        %v660 = vpop.f32.mrf.mxu0
        %v661 = vadd.f32 %v592, %v660
        %662 = vmatmul.bf16.gmra.mxu0 %v637
        %v663 = vpop.f32.mrf.mxu0
        %v664 = vadd.f32 %v592, %v663
        %v665 = vpop.f32.mrf.mxu0
        %v666 = vadd.f32 %v592, %v665
        %667 = vdwg.mxu0
        %v668 = vld [vmem:[#allocation10] sm:$0xf]
        %v669 = vld [vmem:[#allocation10 + $0x4] sm:$0xf]
        %v670 = vld [vmem:[#allocation10 + $0x8] sm:$0xf]
        %v671 = vld [vmem:[#allocation10 + $0xc] sm:$0xf]
        %v672 = vld [vmem:[%s6] sm:$0x1]
        %v674 = vperm.slane %v672, 0
        %v684 = vunpack.c.l.b16 %v570
        %v685 = vunpack.c.l.b16 %v571
        %v686 = vunpack.c.l.b16 %v572
        %v687 = vunpack.c.l.b16 %v573
        %v688 = vunpack.c.l.b16 %v574
        %v689 = vunpack.c.l.b16 %v575
        %v690 = vunpack.c.l.b16 %v576
        %v691 = vunpack.c.l.b16 %v577
        %v692 = vpack.c.b16 %v685, %v684
        %v693 = vpack.c.b16 %v687, %v686
        %v694 = vpack.c.b16 %v689, %v688
        %v695 = vpack.c.b16 %v691, %v690
        %v700 = vunpack.c.l.b16 %v668
        %v701 = vunpack.c.l.b16 %v669
        %v702 = vunpack.c.l.b16 %v670
        %v703 = vunpack.c.l.b16 %v671
        %v704 = vpack.c.b16 %v701, %v700
        %v705 = vpack.c.b16 %v703, %v702
        %v709 = vsel %vm626, %v692, 0
        %v712 = vsel %vm626, %v693, 0
        %v715 = vsel %vm626, %v694, 0
        %v718 = vsel %vm626, %v695, 0
        %720 = vmatpush.bf16.msra.mxu0 0
        %721 = vmatpush.bf16.msra.mxu0 0
        %722 = vmatpush.bf16.msra.mxu0 0
        %723 = vmatpush.bf16.msra.mxu0 0
        %724 = vmatpush.bf16.msra.mxu0 0
        %725 = vmatpush.bf16.msra.mxu0 0
        %726 = vmatpush.bf16.msra.mxu0 %v705
        %727 = vmatpush.bf16.msra.mxu0 %v704
        %728 = vmatmul.bf16.gmra.mxu0 %v709
        %v729 = vpop.f32.mrf.mxu0
        %v730 = vadd.f32 %v674, %v729
        %v731 = vpop.f32.mrf.mxu0
        %v732 = vadd.f32 %v674, %v731
        %733 = vmatmul.bf16.gmra.mxu0 %v712
        %v734 = vpop.f32.mrf.mxu0
        %v735 = vadd.f32 %v674, %v734
        %v736 = vpop.f32.mrf.mxu0
        %v737 = vadd.f32 %v674, %v736
        %738 = vmatmul.bf16.gmra.mxu0 %v715
        %v739 = vpop.f32.mrf.mxu0
        %v740 = vadd.f32 %v674, %v739
        %v741 = vpop.f32.mrf.mxu0
        %v742 = vadd.f32 %v674, %v741
        %743 = vmatmul.bf16.gmra.mxu0 %v718
        %v744 = vpop.f32.mrf.mxu0
        %v745 = vadd.f32 %v674, %v744
        %v746 = vpop.f32.mrf.mxu0
        %v747 = vadd.f32 %v674, %v746
        %748 = vdwg.mxu0
        %v749 = vld [vmem:[#allocation11] sm:$0xf]
        %v750 = vld [vmem:[#allocation11 + $0x4] sm:$0xf]
        %v751 = vld [vmem:[#allocation11 + $0x8] sm:$0xf]
        %v752 = vld [vmem:[#allocation11 + $0xc] sm:$0xf]
        %v753 = vld [vmem:[%s8] sm:$0x1]
        %v755 = vperm.slane %v753, 0
        %v765 = vunpack.c.l.b16 %v578
        %v766 = vunpack.c.l.b16 %v579
        %v767 = vunpack.c.l.b16 %v580
        %v768 = vunpack.c.l.b16 %v581
        %v769 = vunpack.c.l.b16 %v582
        %v770 = vunpack.c.l.b16 %v583
        %v771 = vunpack.c.l.b16 %v584
        %v772 = vunpack.c.l.b16 %v585
        %v773 = vpack.c.b16 %v766, %v765
        %v774 = vpack.c.b16 %v768, %v767
        %v775 = vpack.c.b16 %v770, %v769
        %v776 = vpack.c.b16 %v772, %v771
        %v781 = vunpack.c.l.b16 %v749
        %v782 = vunpack.c.l.b16 %v750
        %v783 = vunpack.c.l.b16 %v751
        %v784 = vunpack.c.l.b16 %v752
        %v785 = vpack.c.b16 %v782, %v781
        %v786 = vpack.c.b16 %v784, %v783
        %v790 = vsel %vm626, %v773, 0
        %v793 = vsel %vm626, %v774, 0
        %v796 = vsel %vm626, %v775, 0
        %v799 = vsel %vm626, %v776, 0
        %801 = vmatpush.bf16.msra.mxu0 0
        %802 = vmatpush.bf16.msra.mxu0 0
        %803 = vmatpush.bf16.msra.mxu0 0
        %804 = vmatpush.bf16.msra.mxu0 0
        %805 = vmatpush.bf16.msra.mxu0 0
        %806 = vmatpush.bf16.msra.mxu0 0
        %807 = vmatpush.bf16.msra.mxu0 %v786
        %808 = vmatpush.bf16.msra.mxu0 %v785
        %809 = vmatmul.bf16.gmra.mxu0 %v790
        %v810 = vpop.f32.mrf.mxu0
        %v811 = vadd.f32 %v755, %v810
        %v812 = vpop.f32.mrf.mxu0
        %v813 = vadd.f32 %v755, %v812
        %814 = vmatmul.bf16.gmra.mxu0 %v793
        %v815 = vpop.f32.mrf.mxu0
        %v816 = vadd.f32 %v755, %v815
        %v817 = vpop.f32.mrf.mxu0
        %v818 = vadd.f32 %v755, %v817
        %819 = vmatmul.bf16.gmra.mxu0 %v796
        %v820 = vpop.f32.mrf.mxu0
        %v821 = vadd.f32 %v755, %v820
        %v822 = vpop.f32.mrf.mxu0
        %v823 = vadd.f32 %v755, %v822
        %824 = vmatmul.bf16.gmra.mxu0 %v799
        %v825 = vpop.f32.mrf.mxu0
        %v826 = vadd.f32 %v755, %v825
        %v827 = vpop.f32.mrf.mxu0
        %v828 = vadd.f32 %v755, %v827
        %829 = vdwg.mxu0
        %v830 = vmul.f32 %v649, 0.35355338
        %v831 = vmul.f32 %v651, 0.35355338
        %v832 = vmul.f32 %v654, 0.35355338
        %v833 = vmul.f32 %v656, 0.35355338
        %v834 = vmul.f32 %v659, 0.35355338
        %v835 = vmul.f32 %v661, 0.35355338
        %v836 = vmul.f32 %v664, 0.35355338
        %v837 = vmul.f32 %v666, 0.35355338
        %v838 = vpack.c.bf16 %v830, %v830
        %v839 = vpack.c.bf16 %v831, %v831
        %v840 = vpack.c.bf16 %v832, %v832
        %v841 = vpack.c.bf16 %v833, %v833
        %v842 = vpack.c.bf16 %v834, %v834
        %v843 = vpack.c.bf16 %v835, %v835
        %v844 = vpack.c.bf16 %v836, %v836
        %v845 = vpack.c.bf16 %v837, %v837
        %v846 = vpack.c.bf16 %v730, %v730
        %v847 = vpack.c.bf16 %v732, %v732
        %v848 = vpack.c.bf16 %v735, %v735
        %v849 = vpack.c.bf16 %v737, %v737
        %v850 = vpack.c.bf16 %v740, %v740
        %v851 = vpack.c.bf16 %v742, %v742
        %v852 = vpack.c.bf16 %v745, %v745
        %v853 = vpack.c.bf16 %v747, %v747
        %v854 = vpack.c.bf16 %v811, %v811
        %v855 = vpack.c.bf16 %v813, %v813
        %v856 = vpack.c.bf16 %v816, %v816
        %v857 = vpack.c.bf16 %v818, %v818
        %v858 = vpack.c.bf16 %v821, %v821
        %v859 = vpack.c.bf16 %v823, %v823
        %v860 = vpack.c.bf16 %v826, %v826
        %v861 = vpack.c.bf16 %v828, %v828
        %v862 = vlaneseq
        %v863 = vshrl.u32 %v862, 7
        %v864 = vadd.s32 %v863, 8
        %v865 = vlaneseq
        %v866 = vand.u32 %v865, 127
        %vm867 = vcmp.le.s32.totalorder %v866, %v863
        %vm868 = vcmp.le.s32.totalorder %v866, %v864
        %v871 = vunpack.c.l.b16 %v838
        %v872 = vunpack.c.l.b16 %v839
        %v873 = vpack.c.b16 %v872, %v871
        %v876 = vunpack.c.l.b16 %v846
        %v877 = vunpack.c.l.b16 %v847
        %v878 = vpack.c.b16 %v877, %v876
        %vm879 = vcmask 64512
        %v881 = vsel %vm879, %v873, 0
        %v884 = vsel %vm879, %v878, 0
        %886 = vmatpush.bf16.xpose.msra.mxu0 0
        %887 = vmatpush.bf16.xpose.msra.mxu0 0
        %888 = vmatpush.bf16.xpose.msra.mxu0 0
        %889 = vmatpush.bf16.xpose.msra.mxu0 0
        %890 = vmatpush.bf16.xpose.msra.mxu0 0
        %891 = vmatpush.bf16.xpose.msra.mxu0 0
        %892 = vmatpush.bf16.xpose.msra.mxu0 0
        %893 = vmatpush.bf16.xpose.msra.mxu0 %v884
        %894 = vmatmul.bf16.gmra.mxu0 %v881
        %v895 = vpop.f32.mrf.mxu0
        %v896 = vadd.f32 0.0, %v895
        %v897 = vpop.f32.mrf.mxu0
        %v898 = vadd.f32 0.0, %v897
        %899 = vdwg.mxu0
        %v902 = vunpack.c.l.b16 %v840
        %v903 = vunpack.c.l.b16 %v841
        %v904 = vpack.c.b16 %v903, %v902
        %v907 = vunpack.c.l.b16 %v848
        %v908 = vunpack.c.l.b16 %v849
        %v909 = vpack.c.b16 %v908, %v907
        %v911 = vsel %vm879, %v904, 0
        %v914 = vsel %vm879, %v909, 0
        %916 = vmatpush.bf16.xpose.msra.mxu0 0
        %917 = vmatpush.bf16.xpose.msra.mxu0 0
        %918 = vmatpush.bf16.xpose.msra.mxu0 0
        %919 = vmatpush.bf16.xpose.msra.mxu0 0
        %920 = vmatpush.bf16.xpose.msra.mxu0 0
        %921 = vmatpush.bf16.xpose.msra.mxu0 0
        %922 = vmatpush.bf16.xpose.msra.mxu0 0
        %923 = vmatpush.bf16.xpose.msra.mxu0 %v914
        %924 = vmatmul.bf16.gmra.mxu0 %v911
        %v925 = vpop.f32.mrf.mxu0
        %v926 = vadd.f32 0.0, %v925
        %v927 = vpop.f32.mrf.mxu0
        %v928 = vadd.f32 0.0, %v927
        %929 = vdwg.mxu0
        %v932 = vunpack.c.l.b16 %v842
        %v933 = vunpack.c.l.b16 %v843
        %v934 = vpack.c.b16 %v933, %v932
        %v937 = vunpack.c.l.b16 %v850
        %v938 = vunpack.c.l.b16 %v851
        %v939 = vpack.c.b16 %v938, %v937
        %v941 = vsel %vm879, %v934, 0
        %v944 = vsel %vm879, %v939, 0
        %946 = vmatpush.bf16.xpose.msra.mxu0 0
        %947 = vmatpush.bf16.xpose.msra.mxu0 0
        %948 = vmatpush.bf16.xpose.msra.mxu0 0
        %949 = vmatpush.bf16.xpose.msra.mxu0 0
        %950 = vmatpush.bf16.xpose.msra.mxu0 0
        %951 = vmatpush.bf16.xpose.msra.mxu0 0
        %952 = vmatpush.bf16.xpose.msra.mxu0 0
        %953 = vmatpush.bf16.xpose.msra.mxu0 %v944
        %954 = vmatmul.bf16.gmra.mxu0 %v941
        %v955 = vpop.f32.mrf.mxu0
        %v956 = vadd.f32 0.0, %v955
        %v957 = vpop.f32.mrf.mxu0
        %v958 = vadd.f32 0.0, %v957
        %959 = vdwg.mxu0
        %v962 = vunpack.c.l.b16 %v844
        %v963 = vunpack.c.l.b16 %v845
        %v964 = vpack.c.b16 %v963, %v962
        %v967 = vunpack.c.l.b16 %v852
        %v968 = vunpack.c.l.b16 %v853
        %v969 = vpack.c.b16 %v968, %v967
        %v971 = vsel %vm879, %v964, 0
        %v974 = vsel %vm879, %v969, 0
        %976 = vmatpush.bf16.xpose.msra.mxu0 0
        %977 = vmatpush.bf16.xpose.msra.mxu0 0
        %978 = vmatpush.bf16.xpose.msra.mxu0 0
        %979 = vmatpush.bf16.xpose.msra.mxu0 0
        %980 = vmatpush.bf16.xpose.msra.mxu0 0
        %981 = vmatpush.bf16.xpose.msra.mxu0 0
        %982 = vmatpush.bf16.xpose.msra.mxu0 0
        %983 = vmatpush.bf16.xpose.msra.mxu0 %v974
        %984 = vmatmul.bf16.gmra.mxu0 %v971
        %v985 = vpop.f32.mrf.mxu0
        %v986 = vadd.f32 0.0, %v985
        %v987 = vpop.f32.mrf.mxu0
        %v988 = vadd.f32 0.0, %v987
        %989 = vdwg.mxu0
        %v990 = vsel %vm867, 1, 0
        %v991 = vsel %vm868, 1, 0
        %vm992 = vcmp.eq.s32.totalorder %v990, 1
        %vm993 = vcmp.eq.s32.totalorder %v991, 1
        %v994 = vsel %vm992, %v896, -1e+30
        %v995 = vsel %vm993, %v898, -1e+30
        %v996 = vsel %vm992, %v926, -1e+30
        %v997 = vsel %vm993, %v928, -1e+30
        %v998 = vsel %vm992, %v956, -1e+30
        %v999 = vsel %vm993, %v958, -1e+30
        %v1000 = vsel %vm992, %v986, -1e+30
        %v1001 = vsel %vm993, %v988, -1e+30
        %vm1002 = vcmask 130048
        %v1003 = vsel %vm1002, %v994, -inf
        %1004 = vmax.xlane.f32.xlu0 %v1003
        %v1005 = vpop.xlane.xlu0 %1004
        %v1006 = vsel %vm1002, %v995, -inf
        %1007 = vmax.xlane.f32.xlu0 %v1006
        %v1008 = vpop.xlane.xlu0 %1007
        %v1009 = vsel %vm1002, %v996, -inf
        %1010 = vmax.xlane.f32.xlu0 %v1009
        %v1011 = vpop.xlane.xlu0 %1010
        %v1012 = vsel %vm1002, %v997, -inf
        %1013 = vmax.xlane.f32.xlu0 %v1012
        %v1014 = vpop.xlane.xlu0 %1013
        %v1015 = vsel %vm1002, %v998, -inf
        %1016 = vmax.xlane.f32.xlu0 %v1015
        %v1017 = vpop.xlane.xlu0 %1016
        %v1018 = vsel %vm1002, %v999, -inf
        %1019 = vmax.xlane.f32.xlu0 %v1018
        %v1020 = vpop.xlane.xlu0 %1019
        %v1021 = vsel %vm1002, %v1000, -inf
        %1022 = vmax.xlane.f32.xlu0 %v1021
        %v1023 = vpop.xlane.xlu0 %1022
        %v1024 = vsel %vm1002, %v1001, -inf
        %1025 = vmax.xlane.f32.xlu0 %v1024
        %v1026 = vpop.xlane.xlu0 %1025
        %v1027 = vsub.f32 %v994, %v1005
        %v1028 = vsub.f32 %v995, %v1008
        %v1029 = vsub.f32 %v996, %v1011
        %v1030 = vsub.f32 %v997, %v1014
        %v1031 = vsub.f32 %v998, %v1017
        %v1032 = vsub.f32 %v999, %v1020
        %v1033 = vsub.f32 %v1000, %v1023
        %v1034 = vsub.f32 %v1001, %v1026
        %v1035 = vmul.f32 %v1027, 1.442695
        %v1036 = vpow.pop %v1035
        %v1037 = vmul.f32 %v1028, 1.442695
        %v1038 = vpow.pop %v1037
        %v1039 = vmul.f32 %v1029, 1.442695
        %v1040 = vpow.pop %v1039
        %v1041 = vmul.f32 %v1030, 1.442695
        %v1042 = vpow.pop %v1041
        %v1043 = vmul.f32 %v1031, 1.442695
        %v1044 = vpow.pop %v1043
        %v1045 = vmul.f32 %v1032, 1.442695
        %v1046 = vpow.pop %v1045
        %v1047 = vmul.f32 %v1033, 1.442695
        %v1048 = vpow.pop %v1047
        %v1049 = vmul.f32 %v1034, 1.442695
        %v1050 = vpow.pop %v1049
        %v1051 = vsel %vm1002, %v1036, 0.0
        %1052 = vadd.xlane.f32.xlu0 %v1051
        %v1053 = vpop.xlane.xlu0 %1052
        %v1054 = vsel %vm1002, %v1038, 0.0
        %1055 = vadd.xlane.f32.xlu0 %v1054
        %v1056 = vpop.xlane.xlu0 %1055
        %v1057 = vsel %vm1002, %v1040, 0.0
        %1058 = vadd.xlane.f32.xlu0 %v1057
        %v1059 = vpop.xlane.xlu0 %1058
        %v1060 = vsel %vm1002, %v1042, 0.0
        %1061 = vadd.xlane.f32.xlu0 %v1060
        %v1062 = vpop.xlane.xlu0 %1061
        %v1063 = vsel %vm1002, %v1044, 0.0
        %1064 = vadd.xlane.f32.xlu0 %v1063
        %v1065 = vpop.xlane.xlu0 %1064
        %v1066 = vsel %vm1002, %v1046, 0.0
        %1067 = vadd.xlane.f32.xlu0 %v1066
        %v1068 = vpop.xlane.xlu0 %1067
        %v1069 = vsel %vm1002, %v1048, 0.0
        %1070 = vadd.xlane.f32.xlu0 %v1069
        %v1071 = vpop.xlane.xlu0 %1070
        %v1072 = vsel %vm1002, %v1050, 0.0
        %1073 = vadd.xlane.f32.xlu0 %v1072
        %v1074 = vpop.xlane.xlu0 %1073
        %v1075 = vrcp.pop %v1053
        %v1076 = vrcp.pop %v1056
        %v1077 = vrcp.pop %v1059
        %v1078 = vrcp.pop %v1062
        %v1079 = vrcp.pop %v1065
        %v1080 = vrcp.pop %v1068
        %v1081 = vrcp.pop %v1071
        %v1082 = vrcp.pop %v1074
        %v1083 = vmul.f32 %v1036, %v1075
        %v1084 = vmul.f32 %v1038, %v1076
        %v1085 = vmul.f32 %v1040, %v1077
        %v1086 = vmul.f32 %v1042, %v1078
        %v1087 = vmul.f32 %v1044, %v1079
        %v1088 = vmul.f32 %v1046, %v1080
        %v1089 = vmul.f32 %v1048, %v1081
        %v1090 = vmul.f32 %v1050, %v1082
        %v1091 = vpack.c.bf16 %v1083, %v1083
        %v1092 = vpack.c.bf16 %v1084, %v1084
        %v1093 = vpack.c.bf16 %v1085, %v1085
        %v1094 = vpack.c.bf16 %v1086, %v1086
        %v1095 = vpack.c.bf16 %v1087, %v1087
        %v1096 = vpack.c.bf16 %v1088, %v1088
        %v1097 = vpack.c.bf16 %v1089, %v1089
        %v1098 = vpack.c.bf16 %v1090, %v1090
        %v1101 = vunpack.c.l.b16 %v1091
        %v1102 = vunpack.c.l.b16 %v1092
        %v1103 = vpack.c.b16 %v1102, %v1101
        %v1106 = vunpack.c.l.b16 %v854
        %v1107 = vunpack.c.l.b16 %v855
        %v1108 = vpack.c.b16 %v1107, %v1106
        %v1111 = vsel %vm1002, %v1103, 0
        %1113 = vmatpush.bf16.msra.mxu0 0
        %1114 = vmatpush.bf16.msra.mxu0 0
        %1115 = vmatpush.bf16.msra.mxu0 0
        %1116 = vmatpush.bf16.msra.mxu0 0
        %1117 = vmatpush.bf16.msra.mxu0 0
        %1118 = vmatpush.bf16.msra.mxu0 0
        %1119 = vmatpush.bf16.msra.mxu0 0
        %1120 = vmatpush.bf16.msra.mxu0 %v1108
        %1121 = vmatmul.bf16.gmra.mxu0 %v1111
        %v1122 = vpop.f32.mrf.mxu0
        %v1123 = vadd.f32 0.0, %v1122
        %v1124 = vpop.f32.mrf.mxu0
        %v1125 = vadd.f32 0.0, %v1124
        %1126 = vdwg.mxu0
        %v1129 = vunpack.c.l.b16 %v1093
        %v1130 = vunpack.c.l.b16 %v1094
        %v1131 = vpack.c.b16 %v1130, %v1129
        %v1134 = vunpack.c.l.b16 %v856
        %v1135 = vunpack.c.l.b16 %v857
        %v1136 = vpack.c.b16 %v1135, %v1134
        %v1139 = vsel %vm1002, %v1131, 0
        %1141 = vmatpush.bf16.msra.mxu0 0
        %1142 = vmatpush.bf16.msra.mxu0 0
        %1143 = vmatpush.bf16.msra.mxu0 0
        %1144 = vmatpush.bf16.msra.mxu0 0
        %1145 = vmatpush.bf16.msra.mxu0 0
        %1146 = vmatpush.bf16.msra.mxu0 0
        %1147 = vmatpush.bf16.msra.mxu0 0
        %1148 = vmatpush.bf16.msra.mxu0 %v1136
        %1149 = vmatmul.bf16.gmra.mxu0 %v1139
        %v1150 = vpop.f32.mrf.mxu0
        %v1151 = vadd.f32 0.0, %v1150
        %v1152 = vpop.f32.mrf.mxu0
        %v1153 = vadd.f32 0.0, %v1152
        %1154 = vdwg.mxu0
        %v1157 = vunpack.c.l.b16 %v1095
        %v1158 = vunpack.c.l.b16 %v1096
        %v1159 = vpack.c.b16 %v1158, %v1157
        %v1162 = vunpack.c.l.b16 %v858
        %v1163 = vunpack.c.l.b16 %v859
        %v1164 = vpack.c.b16 %v1163, %v1162
        %v1167 = vsel %vm1002, %v1159, 0
        %1169 = vmatpush.bf16.msra.mxu0 0
        %1170 = vmatpush.bf16.msra.mxu0 0
        %1171 = vmatpush.bf16.msra.mxu0 0
        %1172 = vmatpush.bf16.msra.mxu0 0
        %1173 = vmatpush.bf16.msra.mxu0 0
        %1174 = vmatpush.bf16.msra.mxu0 0
        %1175 = vmatpush.bf16.msra.mxu0 0
        %1176 = vmatpush.bf16.msra.mxu0 %v1164
        %1177 = vmatmul.bf16.gmra.mxu0 %v1167
        %v1178 = vpop.f32.mrf.mxu0
        %v1179 = vadd.f32 0.0, %v1178
        %v1180 = vpop.f32.mrf.mxu0
        %v1181 = vadd.f32 0.0, %v1180
        %1182 = vdwg.mxu0
        %v1185 = vunpack.c.l.b16 %v1097
        %v1186 = vunpack.c.l.b16 %v1098
        %v1187 = vpack.c.b16 %v1186, %v1185
        %v1190 = vunpack.c.l.b16 %v860
        %v1191 = vunpack.c.l.b16 %v861
        %v1192 = vpack.c.b16 %v1191, %v1190
        %v1195 = vsel %vm1002, %v1187, 0
        %1197 = vmatpush.bf16.msra.mxu0 0
        %1198 = vmatpush.bf16.msra.mxu0 0
        %1199 = vmatpush.bf16.msra.mxu0 0
        %1200 = vmatpush.bf16.msra.mxu0 0
        %1201 = vmatpush.bf16.msra.mxu0 0
        %1202 = vmatpush.bf16.msra.mxu0 0
        %1203 = vmatpush.bf16.msra.mxu0 0
        %1204 = vmatpush.bf16.msra.mxu0 %v1192
        %1205 = vmatmul.bf16.gmra.mxu0 %v1195
        %v1206 = vpop.f32.mrf.mxu0
        %v1207 = vadd.f32 0.0, %v1206
        %v1208 = vpop.f32.mrf.mxu0
        %v1209 = vadd.f32 0.0, %v1208
        %1210 = vdwg.mxu0
        %v1211 = vpack.c.bf16 %v1125, %v1123
        %v1212 = vpack.c.bf16 %v1153, %v1151
        %v1213 = vpack.c.bf16 %v1181, %v1179
        %v1214 = vpack.c.bf16 %v1209, %v1207
        %v1215 = vld [vmem:[#allocation13] sm:$0xf]
        %1216 = vrot.lane.b32.xlu0 %v873, 120
        %v1217 = vpop.permute.xlu0 %1216
        %1218 = vrot.lane.b32.xlu0 %v878, 120
        %v1219 = vpop.permute.xlu0 %1218
        %v1221 = vsel %vm879, %v1217, 0
        %v1224 = vsel %vm879, %v1219, 0
        %1226 = vmatpush.bf16.xpose.msra.mxu0 0
        %1227 = vmatpush.bf16.xpose.msra.mxu0 0
        %1228 = vmatpush.bf16.xpose.msra.mxu0 0
        %1229 = vmatpush.bf16.xpose.msra.mxu0 0
        %1230 = vmatpush.bf16.xpose.msra.mxu0 0
        %1231 = vmatpush.bf16.xpose.msra.mxu0 0
        %1232 = vmatpush.bf16.xpose.msra.mxu0 0
        %1233 = vmatpush.bf16.xpose.msra.mxu0 %v1224
        %1234 = vmatmul.bf16.gmra.mxu0 %v1221
        %v1235 = vpop.f32.mrf.mxu0
        %v1236 = vadd.f32 0.0, %v1235
        %v1237 = vpop.f32.mrf.mxu0
        %v1238 = vadd.f32 0.0, %v1237
        %1239 = vdwg.mxu0
        %1240 = vrot.lane.b32.xlu0 %v904, 120
        %v1241 = vpop.permute.xlu0 %1240
        %1242 = vrot.lane.b32.xlu0 %v909, 120
        %v1243 = vpop.permute.xlu0 %1242
        %v1245 = vsel %vm879, %v1241, 0
        %v1248 = vsel %vm879, %v1243, 0
        %1250 = vmatpush.bf16.xpose.msra.mxu0 0
        %1251 = vmatpush.bf16.xpose.msra.mxu0 0
        %1252 = vmatpush.bf16.xpose.msra.mxu0 0
        %1253 = vmatpush.bf16.xpose.msra.mxu0 0
        %1254 = vmatpush.bf16.xpose.msra.mxu0 0
        %1255 = vmatpush.bf16.xpose.msra.mxu0 0
        %1256 = vmatpush.bf16.xpose.msra.mxu0 0
        %1257 = vmatpush.bf16.xpose.msra.mxu0 %v1248
        %1258 = vmatmul.bf16.gmra.mxu0 %v1245
        %v1259 = vpop.f32.mrf.mxu0
        %v1260 = vadd.f32 0.0, %v1259
        %v1261 = vpop.f32.mrf.mxu0
        %v1262 = vadd.f32 0.0, %v1261
        %1263 = vdwg.mxu0
        %1264 = vrot.lane.b32.xlu0 %v934, 120
        %v1265 = vpop.permute.xlu0 %1264
        %1266 = vrot.lane.b32.xlu0 %v939, 120
        %v1267 = vpop.permute.xlu0 %1266
        %v1269 = vsel %vm879, %v1265, 0
        %v1272 = vsel %vm879, %v1267, 0
        %1274 = vmatpush.bf16.xpose.msra.mxu0 0
        %1275 = vmatpush.bf16.xpose.msra.mxu0 0
        %1276 = vmatpush.bf16.xpose.msra.mxu0 0
        %1277 = vmatpush.bf16.xpose.msra.mxu0 0
        %1278 = vmatpush.bf16.xpose.msra.mxu0 0
        %1279 = vmatpush.bf16.xpose.msra.mxu0 0
        %1280 = vmatpush.bf16.xpose.msra.mxu0 0
        %1281 = vmatpush.bf16.xpose.msra.mxu0 %v1272
        %1282 = vmatmul.bf16.gmra.mxu0 %v1269
        %v1283 = vpop.f32.mrf.mxu0
        %v1284 = vadd.f32 0.0, %v1283
        %v1285 = vpop.f32.mrf.mxu0
        %v1286 = vadd.f32 0.0, %v1285
        %1287 = vdwg.mxu0
        %1288 = vrot.lane.b32.xlu0 %v964, 120
        %v1289 = vpop.permute.xlu0 %1288
        %1290 = vrot.lane.b32.xlu0 %v969, 120
        %v1291 = vpop.permute.xlu0 %1290
        %v1293 = vsel %vm879, %v1289, 0
        %v1296 = vsel %vm879, %v1291, 0
        %1298 = vmatpush.bf16.xpose.msra.mxu0 0
        %1299 = vmatpush.bf16.xpose.msra.mxu0 0
        %1300 = vmatpush.bf16.xpose.msra.mxu0 0
        %1301 = vmatpush.bf16.xpose.msra.mxu0 0
        %1302 = vmatpush.bf16.xpose.msra.mxu0 0
        %1303 = vmatpush.bf16.xpose.msra.mxu0 0
        %1304 = vmatpush.bf16.xpose.msra.mxu0 0
        %1305 = vmatpush.bf16.xpose.msra.mxu0 %v1296
        %1306 = vmatmul.bf16.gmra.mxu0 %v1293
        %v1307 = vpop.f32.mrf.mxu0
        %v1308 = vadd.f32 0.0, %v1307
        %v1309 = vpop.f32.mrf.mxu0
        %v1310 = vadd.f32 0.0, %v1309
        %1311 = vdwg.mxu0
        %v1312 = vsel %vm992, %v1236, -1e+30
        %v1313 = vsel %vm993, %v1238, -1e+30
        %v1314 = vsel %vm992, %v1260, -1e+30
        %v1315 = vsel %vm993, %v1262, -1e+30
        %v1316 = vsel %vm992, %v1284, -1e+30
        %v1317 = vsel %vm993, %v1286, -1e+30
        %v1318 = vsel %vm992, %v1308, -1e+30
        %v1319 = vsel %vm993, %v1310, -1e+30
        %v1320 = vsel %vm1002, %v1312, -inf
        %1321 = vmax.xlane.f32.xlu0 %v1320
        %v1322 = vpop.xlane.xlu0 %1321
        %v1323 = vsel %vm1002, %v1313, -inf
        %1324 = vmax.xlane.f32.xlu0 %v1323
        %v1325 = vpop.xlane.xlu0 %1324
        %v1326 = vsel %vm1002, %v1314, -inf
        %1327 = vmax.xlane.f32.xlu0 %v1326
        %v1328 = vpop.xlane.xlu0 %1327
        %v1329 = vsel %vm1002, %v1315, -inf
        %1330 = vmax.xlane.f32.xlu0 %v1329
        %v1331 = vpop.xlane.xlu0 %1330
        %v1332 = vsel %vm1002, %v1316, -inf
        %1333 = vmax.xlane.f32.xlu0 %v1332
        %v1334 = vpop.xlane.xlu0 %1333
        %v1335 = vsel %vm1002, %v1317, -inf
        %1336 = vmax.xlane.f32.xlu0 %v1335
        %v1337 = vpop.xlane.xlu0 %1336
        %v1338 = vsel %vm1002, %v1318, -inf
        %1339 = vmax.xlane.f32.xlu0 %v1338
        %v1340 = vpop.xlane.xlu0 %1339
        %v1341 = vsel %vm1002, %v1319, -inf
        %1342 = vmax.xlane.f32.xlu0 %v1341
        %v1343 = vpop.xlane.xlu0 %1342
        %v1344 = vsub.f32 %v1312, %v1322
        %v1345 = vsub.f32 %v1313, %v1325
        %v1346 = vsub.f32 %v1314, %v1328
        %v1347 = vsub.f32 %v1315, %v1331
        %v1348 = vsub.f32 %v1316, %v1334
        %v1349 = vsub.f32 %v1317, %v1337
        %v1350 = vsub.f32 %v1318, %v1340
        %v1351 = vsub.f32 %v1319, %v1343
        %v1352 = vmul.f32 %v1344, 1.442695
        %v1353 = vpow.pop %v1352
        %v1354 = vmul.f32 %v1345, 1.442695
        %v1355 = vpow.pop %v1354
        %v1356 = vmul.f32 %v1346, 1.442695
        %v1357 = vpow.pop %v1356
        %v1358 = vmul.f32 %v1347, 1.442695
        %v1359 = vpow.pop %v1358
        %v1360 = vmul.f32 %v1348, 1.442695
        %v1361 = vpow.pop %v1360
        %v1362 = vmul.f32 %v1349, 1.442695
        %v1363 = vpow.pop %v1362
        %v1364 = vmul.f32 %v1350, 1.442695
        %v1365 = vpow.pop %v1364
        %v1366 = vmul.f32 %v1351, 1.442695
        %v1367 = vpow.pop %v1366
        %v1368 = vsel %vm1002, %v1353, 0.0
        %1369 = vadd.xlane.f32.xlu0 %v1368
        %v1370 = vpop.xlane.xlu0 %1369
        %v1371 = vsel %vm1002, %v1355, 0.0
        %1372 = vadd.xlane.f32.xlu0 %v1371
        %v1373 = vpop.xlane.xlu0 %1372
        %v1374 = vsel %vm1002, %v1357, 0.0
        %1375 = vadd.xlane.f32.xlu0 %v1374
        %v1376 = vpop.xlane.xlu0 %1375
        %v1377 = vsel %vm1002, %v1359, 0.0
        %1378 = vadd.xlane.f32.xlu0 %v1377
        %v1379 = vpop.xlane.xlu0 %1378
        %v1380 = vsel %vm1002, %v1361, 0.0
        %1381 = vadd.xlane.f32.xlu0 %v1380
        %v1382 = vpop.xlane.xlu0 %1381
        %v1383 = vsel %vm1002, %v1363, 0.0
        %1384 = vadd.xlane.f32.xlu0 %v1383
        %v1385 = vpop.xlane.xlu0 %1384
        %v1386 = vsel %vm1002, %v1365, 0.0
        %1387 = vadd.xlane.f32.xlu0 %v1386
        %v1388 = vpop.xlane.xlu0 %1387
        %v1389 = vsel %vm1002, %v1367, 0.0
        %1390 = vadd.xlane.f32.xlu0 %v1389
        %v1391 = vpop.xlane.xlu0 %1390
        %v1392 = vrcp.pop %v1370
        %v1393 = vrcp.pop %v1373
        %v1394 = vrcp.pop %v1376
        %v1395 = vrcp.pop %v1379
        %v1396 = vrcp.pop %v1382
        %v1397 = vrcp.pop %v1385
        %v1398 = vrcp.pop %v1388
        %v1399 = vrcp.pop %v1391
        %v1400 = vmul.f32 %v1353, %v1392
        %v1401 = vmul.f32 %v1355, %v1393
        %v1402 = vmul.f32 %v1357, %v1394
        %v1403 = vmul.f32 %v1359, %v1395
        %v1404 = vmul.f32 %v1361, %v1396
        %v1405 = vmul.f32 %v1363, %v1397
        %v1406 = vmul.f32 %v1365, %v1398
        %v1407 = vmul.f32 %v1367, %v1399
        %v1408 = vpack.c.bf16 %v1400, %v1400
        %v1409 = vpack.c.bf16 %v1401, %v1401
        %v1410 = vpack.c.bf16 %v1402, %v1402
        %v1411 = vpack.c.bf16 %v1403, %v1403
        %v1412 = vpack.c.bf16 %v1404, %v1404
        %v1413 = vpack.c.bf16 %v1405, %v1405
        %v1414 = vpack.c.bf16 %v1406, %v1406
        %v1415 = vpack.c.bf16 %v1407, %v1407
        %v1418 = vunpack.c.l.b16 %v1408
        %v1419 = vunpack.c.l.b16 %v1409
        %v1420 = vpack.c.b16 %v1419, %v1418
        %1421 = vrot.lane.b32.xlu0 %v1108, 120
        %v1422 = vpop.permute.xlu0 %1421
        %v1425 = vsel %vm1002, %v1420, 0
        %1427 = vmatpush.bf16.msra.mxu0 0
        %1428 = vmatpush.bf16.msra.mxu0 0
        %1429 = vmatpush.bf16.msra.mxu0 0
        %1430 = vmatpush.bf16.msra.mxu0 0
        %1431 = vmatpush.bf16.msra.mxu0 0
        %1432 = vmatpush.bf16.msra.mxu0 0
        %1433 = vmatpush.bf16.msra.mxu0 0
        %1434 = vmatpush.bf16.msra.mxu0 %v1422
        %1435 = vmatmul.bf16.gmra.mxu0 %v1425
        %v1436 = vpop.f32.mrf.mxu0
        %v1437 = vadd.f32 0.0, %v1436
        %v1438 = vpop.f32.mrf.mxu0
        %v1439 = vadd.f32 0.0, %v1438
        %1440 = vdwg.mxu0
        %v1443 = vunpack.c.l.b16 %v1410
        %v1444 = vunpack.c.l.b16 %v1411
        %v1445 = vpack.c.b16 %v1444, %v1443
        %1446 = vrot.lane.b32.xlu0 %v1136, 120
        %v1447 = vpop.permute.xlu0 %1446
        %v1450 = vsel %vm1002, %v1445, 0
        %1452 = vmatpush.bf16.msra.mxu0 0
        %1453 = vmatpush.bf16.msra.mxu0 0
        %1454 = vmatpush.bf16.msra.mxu0 0
        %1455 = vmatpush.bf16.msra.mxu0 0
        %1456 = vmatpush.bf16.msra.mxu0 0
        %1457 = vmatpush.bf16.msra.mxu0 0
        %1458 = vmatpush.bf16.msra.mxu0 0
        %1459 = vmatpush.bf16.msra.mxu0 %v1447
        %1460 = vmatmul.bf16.gmra.mxu0 %v1450
        %v1461 = vpop.f32.mrf.mxu0
        %v1462 = vadd.f32 0.0, %v1461
        %v1463 = vpop.f32.mrf.mxu0
        %v1464 = vadd.f32 0.0, %v1463
        %1465 = vdwg.mxu0
        %v1468 = vunpack.c.l.b16 %v1412
        %v1469 = vunpack.c.l.b16 %v1413
        %v1470 = vpack.c.b16 %v1469, %v1468
        %1471 = vrot.lane.b32.xlu0 %v1164, 120
        %v1472 = vpop.permute.xlu0 %1471
        %v1475 = vsel %vm1002, %v1470, 0
        %1477 = vmatpush.bf16.msra.mxu0 0
        %1478 = vmatpush.bf16.msra.mxu0 0
        %1479 = vmatpush.bf16.msra.mxu0 0
        %1480 = vmatpush.bf16.msra.mxu0 0
        %1481 = vmatpush.bf16.msra.mxu0 0
        %1482 = vmatpush.bf16.msra.mxu0 0
        %1483 = vmatpush.bf16.msra.mxu0 0
        %1484 = vmatpush.bf16.msra.mxu0 %v1472
        %1485 = vmatmul.bf16.gmra.mxu0 %v1475
        %v1486 = vpop.f32.mrf.mxu0
        %v1487 = vadd.f32 0.0, %v1486
        %v1488 = vpop.f32.mrf.mxu0
        %v1489 = vadd.f32 0.0, %v1488
        %1490 = vdwg.mxu0
        %v1493 = vunpack.c.l.b16 %v1414
        %v1494 = vunpack.c.l.b16 %v1415
        %v1495 = vpack.c.b16 %v1494, %v1493
        %1496 = vrot.lane.b32.xlu0 %v1192, 120
        %v1497 = vpop.permute.xlu0 %1496
        %v1500 = vsel %vm1002, %v1495, 0
        %1502 = vmatpush.bf16.msra.mxu0 0
        %1503 = vmatpush.bf16.msra.mxu0 0
        %1504 = vmatpush.bf16.msra.mxu0 0
        %1505 = vmatpush.bf16.msra.mxu0 0
        %1506 = vmatpush.bf16.msra.mxu0 0
        %1507 = vmatpush.bf16.msra.mxu0 0
        %1508 = vmatpush.bf16.msra.mxu0 0
        %1509 = vmatpush.bf16.msra.mxu0 %v1497
        %1510 = vmatmul.bf16.gmra.mxu0 %v1500
        %v1511 = vpop.f32.mrf.mxu0
        %v1512 = vadd.f32 0.0, %v1511
        %v1513 = vpop.f32.mrf.mxu0
        %v1514 = vadd.f32 0.0, %v1513
        %1515 = vdwg.mxu0
        %v1516 = vpack.c.bf16 %v1439, %v1437
        %v1517 = vpack.c.bf16 %v1464, %v1462
        %v1518 = vpack.c.bf16 %v1489, %v1487
        %v1519 = vpack.c.bf16 %v1514, %v1512
        %v1520 = vld [vmem:[#allocation13 + $0x4] sm:$0xf]
        %v1522 = vsel %vm879, %v1516, 0
        %v1525 = vsel %vm879, %v1517, 0
        %v1528 = vsel %vm879, %v1518, 0
        %v1531 = vsel %vm879, %v1519, 0
        %vm1533 = vcmask 1043456
        %v1535 = vsel %vm1533, %v1520, 0
        %1537 = vmatpush.bf16.msra.mxu0 0
        %1538 = vmatpush.bf16.msra.mxu0 0
        %1539 = vmatpush.bf16.msra.mxu0 0
        %1540 = vmatpush.bf16.msra.mxu0 0
        %1541 = vmatpush.bf16.msra.mxu0 0
        %1542 = vmatpush.bf16.msra.mxu0 0
        %1543 = vmatpush.bf16.msra.mxu0 0
        %1544 = vmatpush.bf16.msra.mxu0 %v1535
        %1545 = vmatmul.bf16.gmra.mxu0 %v1522
        %v1546 = vpop.f32.mrf.mxu0
        %v1547 = vadd.f32 0.0, %v1546
        %v1548 = vpop.f32.mrf.mxu0
        %v1549 = vadd.f32 0.0, %v1548
        %1550 = vmatmul.bf16.gmra.mxu0 %v1525
        %v1551 = vpop.f32.mrf.mxu0
        %v1552 = vadd.f32 0.0, %v1551
        %v1553 = vpop.f32.mrf.mxu0
        %v1554 = vadd.f32 0.0, %v1553
        %1555 = vmatmul.bf16.gmra.mxu0 %v1528
        %v1556 = vpop.f32.mrf.mxu0
        %v1557 = vadd.f32 0.0, %v1556
        %v1558 = vpop.f32.mrf.mxu0
        %v1559 = vadd.f32 0.0, %v1558
        %1560 = vmatmul.bf16.gmra.mxu0 %v1531
        %v1561 = vpop.f32.mrf.mxu0
        %v1562 = vadd.f32 0.0, %v1561
        %v1563 = vpop.f32.mrf.mxu0
        %v1564 = vadd.f32 0.0, %v1563
        %1565 = vdwg.mxu0
        %v1567 = vsel %vm879, %v1211, 0
        %v1570 = vsel %vm879, %v1212, 0
        %v1573 = vsel %vm879, %v1213, 0
        %v1576 = vsel %vm879, %v1214, 0
        %v1579 = vsel %vm1533, %v1215, 0
        %1581 = vmatpush.bf16.msra.mxu0 0
        %1582 = vmatpush.bf16.msra.mxu0 0
        %1583 = vmatpush.bf16.msra.mxu0 0
        %1584 = vmatpush.bf16.msra.mxu0 0
        %1585 = vmatpush.bf16.msra.mxu0 0
        %1586 = vmatpush.bf16.msra.mxu0 0
        %1587 = vmatpush.bf16.msra.mxu0 0
        %1588 = vmatpush.bf16.msra.mxu0 %v1579
        %1589 = vmatmul.bf16.gmra.mxu0 %v1567
        %v1590 = vpop.f32.mrf.mxu0
        %v1591 = vadd.f32 %v1547, %v1590
        %v1592 = vpop.f32.mrf.mxu0
        %v1593 = vadd.f32 %v1549, %v1592
        %1594 = vmatmul.bf16.gmra.mxu0 %v1570
        %v1595 = vpop.f32.mrf.mxu0
        %v1596 = vadd.f32 %v1552, %v1595
        %v1597 = vpop.f32.mrf.mxu0
        %v1598 = vadd.f32 %v1554, %v1597
        %1599 = vmatmul.bf16.gmra.mxu0 %v1573
        %v1600 = vpop.f32.mrf.mxu0
        %v1601 = vadd.f32 %v1557, %v1600
        %v1602 = vpop.f32.mrf.mxu0
        %v1603 = vadd.f32 %v1559, %v1602
        %1604 = vmatmul.bf16.gmra.mxu0 %v1576
        %v1605 = vpop.f32.mrf.mxu0
        %v1606 = vadd.f32 %v1562, %v1605
        %v1607 = vpop.f32.mrf.mxu0
        %v1608 = vadd.f32 %v1564, %v1607
        %1609 = vdwg.mxu0
        %1610 = vrot.lane.b32.xlu0 %v873, 112
        %v1611 = vpop.permute.xlu0 %1610
        %1612 = vrot.lane.b32.xlu0 %v878, 112
        %v1613 = vpop.permute.xlu0 %1612
        %v1615 = vsel %vm879, %v1611, 0
        %v1618 = vsel %vm879, %v1613, 0
        %1620 = vmatpush.bf16.xpose.msra.mxu0 0
        %1621 = vmatpush.bf16.xpose.msra.mxu0 0
        %1622 = vmatpush.bf16.xpose.msra.mxu0 0
        %1623 = vmatpush.bf16.xpose.msra.mxu0 0
        %1624 = vmatpush.bf16.xpose.msra.mxu0 0
        %1625 = vmatpush.bf16.xpose.msra.mxu0 0
        %1626 = vmatpush.bf16.xpose.msra.mxu0 0
        %1627 = vmatpush.bf16.xpose.msra.mxu0 %v1618
        %1628 = vmatmul.bf16.gmra.mxu0 %v1615
        %v1629 = vpop.f32.mrf.mxu0
        %v1630 = vadd.f32 0.0, %v1629
        %v1631 = vpop.f32.mrf.mxu0
        %v1632 = vadd.f32 0.0, %v1631
        %1633 = vdwg.mxu0
        %1634 = vrot.lane.b32.xlu0 %v904, 112
        %v1635 = vpop.permute.xlu0 %1634
        %1636 = vrot.lane.b32.xlu0 %v909, 112
        %v1637 = vpop.permute.xlu0 %1636
        %v1639 = vsel %vm879, %v1635, 0
        %v1642 = vsel %vm879, %v1637, 0
        %1644 = vmatpush.bf16.xpose.msra.mxu0 0
        %1645 = vmatpush.bf16.xpose.msra.mxu0 0
        %1646 = vmatpush.bf16.xpose.msra.mxu0 0
        %1647 = vmatpush.bf16.xpose.msra.mxu0 0
        %1648 = vmatpush.bf16.xpose.msra.mxu0 0
        %1649 = vmatpush.bf16.xpose.msra.mxu0 0
        %1650 = vmatpush.bf16.xpose.msra.mxu0 0
        %1651 = vmatpush.bf16.xpose.msra.mxu0 %v1642
        %1652 = vmatmul.bf16.gmra.mxu0 %v1639
        %v1653 = vpop.f32.mrf.mxu0
        %v1654 = vadd.f32 0.0, %v1653
        %v1655 = vpop.f32.mrf.mxu0
        %v1656 = vadd.f32 0.0, %v1655
        %1657 = vdwg.mxu0
        %1658 = vrot.lane.b32.xlu0 %v934, 112
        %v1659 = vpop.permute.xlu0 %1658
        %1660 = vrot.lane.b32.xlu0 %v939, 112
        %v1661 = vpop.permute.xlu0 %1660
        %v1663 = vsel %vm879, %v1659, 0
        %v1666 = vsel %vm879, %v1661, 0
        %1668 = vmatpush.bf16.xpose.msra.mxu0 0
        %1669 = vmatpush.bf16.xpose.msra.mxu0 0
        %1670 = vmatpush.bf16.xpose.msra.mxu0 0
        %1671 = vmatpush.bf16.xpose.msra.mxu0 0
        %1672 = vmatpush.bf16.xpose.msra.mxu0 0
        %1673 = vmatpush.bf16.xpose.msra.mxu0 0
        %1674 = vmatpush.bf16.xpose.msra.mxu0 0
        %1675 = vmatpush.bf16.xpose.msra.mxu0 %v1666
        %1676 = vmatmul.bf16.gmra.mxu0 %v1663
        %v1677 = vpop.f32.mrf.mxu0
        %v1678 = vadd.f32 0.0, %v1677
        %v1679 = vpop.f32.mrf.mxu0
        %v1680 = vadd.f32 0.0, %v1679
        %1681 = vdwg.mxu0
        %1682 = vrot.lane.b32.xlu0 %v964, 112
        %v1683 = vpop.permute.xlu0 %1682
        %1684 = vrot.lane.b32.xlu0 %v969, 112
        %v1685 = vpop.permute.xlu0 %1684
        %v1687 = vsel %vm879, %v1683, 0
        %v1690 = vsel %vm879, %v1685, 0
        %1692 = vmatpush.bf16.xpose.msra.mxu0 0
        %1693 = vmatpush.bf16.xpose.msra.mxu0 0
        %1694 = vmatpush.bf16.xpose.msra.mxu0 0
        %1695 = vmatpush.bf16.xpose.msra.mxu0 0
        %1696 = vmatpush.bf16.xpose.msra.mxu0 0
        %1697 = vmatpush.bf16.xpose.msra.mxu0 0
        %1698 = vmatpush.bf16.xpose.msra.mxu0 0
        %1699 = vmatpush.bf16.xpose.msra.mxu0 %v1690
        %1700 = vmatmul.bf16.gmra.mxu0 %v1687
        %v1701 = vpop.f32.mrf.mxu0
        %v1702 = vadd.f32 0.0, %v1701
        %v1703 = vpop.f32.mrf.mxu0
        %v1704 = vadd.f32 0.0, %v1703
        %1705 = vdwg.mxu0
        %v1706 = vsel %vm992, %v1630, -1e+30
        %v1707 = vsel %vm993, %v1632, -1e+30
        %v1708 = vsel %vm992, %v1654, -1e+30
        %v1709 = vsel %vm993, %v1656, -1e+30
        %v1710 = vsel %vm992, %v1678, -1e+30
        %v1711 = vsel %vm993, %v1680, -1e+30
        %v1712 = vsel %vm992, %v1702, -1e+30
        %v1713 = vsel %vm993, %v1704, -1e+30
        %v1714 = vsel %vm1002, %v1706, -inf
        %1715 = vmax.xlane.f32.xlu0 %v1714
        %v1716 = vpop.xlane.xlu0 %1715
        %v1717 = vsel %vm1002, %v1707, -inf
        %1718 = vmax.xlane.f32.xlu0 %v1717
        %v1719 = vpop.xlane.xlu0 %1718
        %v1720 = vsel %vm1002, %v1708, -inf
        %1721 = vmax.xlane.f32.xlu0 %v1720
        %v1722 = vpop.xlane.xlu0 %1721
        %v1723 = vsel %vm1002, %v1709, -inf
        %1724 = vmax.xlane.f32.xlu0 %v1723
        %v1725 = vpop.xlane.xlu0 %1724
        %v1726 = vsel %vm1002, %v1710, -inf
        %1727 = vmax.xlane.f32.xlu0 %v1726
        %v1728 = vpop.xlane.xlu0 %1727
        %v1729 = vsel %vm1002, %v1711, -inf
        %1730 = vmax.xlane.f32.xlu0 %v1729
        %v1731 = vpop.xlane.xlu0 %1730
        %v1732 = vsel %vm1002, %v1712, -inf
        %1733 = vmax.xlane.f32.xlu0 %v1732
        %v1734 = vpop.xlane.xlu0 %1733
        %v1735 = vsel %vm1002, %v1713, -inf
        %1736 = vmax.xlane.f32.xlu0 %v1735
        %v1737 = vpop.xlane.xlu0 %1736
        %v1738 = vsub.f32 %v1706, %v1716
        %v1739 = vsub.f32 %v1707, %v1719
        %v1740 = vsub.f32 %v1708, %v1722
        %v1741 = vsub.f32 %v1709, %v1725
        %v1742 = vsub.f32 %v1710, %v1728
        %v1743 = vsub.f32 %v1711, %v1731
        %v1744 = vsub.f32 %v1712, %v1734
        %v1745 = vsub.f32 %v1713, %v1737
        %v1746 = vmul.f32 %v1738, 1.442695
        %v1747 = vpow.pop %v1746
        %v1748 = vmul.f32 %v1739, 1.442695
        %v1749 = vpow.pop %v1748
        %v1750 = vmul.f32 %v1740, 1.442695
        %v1751 = vpow.pop %v1750
        %v1752 = vmul.f32 %v1741, 1.442695
        %v1753 = vpow.pop %v1752
        %v1754 = vmul.f32 %v1742, 1.442695
        %v1755 = vpow.pop %v1754
        %v1756 = vmul.f32 %v1743, 1.442695
        %v1757 = vpow.pop %v1756
        %v1758 = vmul.f32 %v1744, 1.442695
        %v1759 = vpow.pop %v1758
        %v1760 = vmul.f32 %v1745, 1.442695
        %v1761 = vpow.pop %v1760
        %v1762 = vsel %vm1002, %v1747, 0.0
        %1763 = vadd.xlane.f32.xlu0 %v1762
        %v1764 = vpop.xlane.xlu0 %1763
        %v1765 = vsel %vm1002, %v1749, 0.0
        %1766 = vadd.xlane.f32.xlu0 %v1765
        %v1767 = vpop.xlane.xlu0 %1766
        %v1768 = vsel %vm1002, %v1751, 0.0
        %1769 = vadd.xlane.f32.xlu0 %v1768
        %v1770 = vpop.xlane.xlu0 %1769
        %v1771 = vsel %vm1002, %v1753, 0.0
        %1772 = vadd.xlane.f32.xlu0 %v1771
        %v1773 = vpop.xlane.xlu0 %1772
        %v1774 = vsel %vm1002, %v1755, 0.0
        %1775 = vadd.xlane.f32.xlu0 %v1774
        %v1776 = vpop.xlane.xlu0 %1775
        %v1777 = vsel %vm1002, %v1757, 0.0
        %1778 = vadd.xlane.f32.xlu0 %v1777
        %v1779 = vpop.xlane.xlu0 %1778
        %v1780 = vsel %vm1002, %v1759, 0.0
        %1781 = vadd.xlane.f32.xlu0 %v1780
        %v1782 = vpop.xlane.xlu0 %1781
        %v1783 = vsel %vm1002, %v1761, 0.0
        %1784 = vadd.xlane.f32.xlu0 %v1783
        %v1785 = vpop.xlane.xlu0 %1784
        %v1786 = vrcp.pop %v1764
        %v1787 = vrcp.pop %v1767
        %v1788 = vrcp.pop %v1770
        %v1789 = vrcp.pop %v1773
        %v1790 = vrcp.pop %v1776
        %v1791 = vrcp.pop %v1779
        %v1792 = vrcp.pop %v1782
        %v1793 = vrcp.pop %v1785
        %v1794 = vmul.f32 %v1747, %v1786
        %v1795 = vmul.f32 %v1749, %v1787
        %v1796 = vmul.f32 %v1751, %v1788
        %v1797 = vmul.f32 %v1753, %v1789
        %v1798 = vmul.f32 %v1755, %v1790
        %v1799 = vmul.f32 %v1757, %v1791
        %v1800 = vmul.f32 %v1759, %v1792
        %v1801 = vmul.f32 %v1761, %v1793
        %v1802 = vpack.c.bf16 %v1794, %v1794
        %v1803 = vpack.c.bf16 %v1795, %v1795
        %v1804 = vpack.c.bf16 %v1796, %v1796
        %v1805 = vpack.c.bf16 %v1797, %v1797
        %v1806 = vpack.c.bf16 %v1798, %v1798
        %v1807 = vpack.c.bf16 %v1799, %v1799
        %v1808 = vpack.c.bf16 %v1800, %v1800
        %v1809 = vpack.c.bf16 %v1801, %v1801
        %v1812 = vunpack.c.l.b16 %v1802
        %v1813 = vunpack.c.l.b16 %v1803
        %v1814 = vpack.c.b16 %v1813, %v1812
        %1815 = vrot.lane.b32.xlu0 %v1108, 112
        %v1816 = vpop.permute.xlu0 %1815
        %v1819 = vsel %vm1002, %v1814, 0
        %1821 = vmatpush.bf16.msra.mxu0 0
        %1822 = vmatpush.bf16.msra.mxu0 0
        %1823 = vmatpush.bf16.msra.mxu0 0
        %1824 = vmatpush.bf16.msra.mxu0 0
        %1825 = vmatpush.bf16.msra.mxu0 0
        %1826 = vmatpush.bf16.msra.mxu0 0
        %1827 = vmatpush.bf16.msra.mxu0 0
        %1828 = vmatpush.bf16.msra.mxu0 %v1816
        %1829 = vmatmul.bf16.gmra.mxu0 %v1819
        %v1830 = vpop.f32.mrf.mxu0
        %v1831 = vadd.f32 0.0, %v1830
        %v1832 = vpop.f32.mrf.mxu0
        %v1833 = vadd.f32 0.0, %v1832
        %1834 = vdwg.mxu0
        %v1837 = vunpack.c.l.b16 %v1804
        %v1838 = vunpack.c.l.b16 %v1805
        %v1839 = vpack.c.b16 %v1838, %v1837
        %1840 = vrot.lane.b32.xlu0 %v1136, 112
        %v1841 = vpop.permute.xlu0 %1840
        %v1844 = vsel %vm1002, %v1839, 0
        %1846 = vmatpush.bf16.msra.mxu0 0
        %1847 = vmatpush.bf16.msra.mxu0 0
        %1848 = vmatpush.bf16.msra.mxu0 0
        %1849 = vmatpush.bf16.msra.mxu0 0
        %1850 = vmatpush.bf16.msra.mxu0 0
        %1851 = vmatpush.bf16.msra.mxu0 0
        %1852 = vmatpush.bf16.msra.mxu0 0
        %1853 = vmatpush.bf16.msra.mxu0 %v1841
        %1854 = vmatmul.bf16.gmra.mxu0 %v1844
        %v1855 = vpop.f32.mrf.mxu0
        %v1856 = vadd.f32 0.0, %v1855
        %v1857 = vpop.f32.mrf.mxu0
        %v1858 = vadd.f32 0.0, %v1857
        %1859 = vdwg.mxu0
        %v1862 = vunpack.c.l.b16 %v1806
        %v1863 = vunpack.c.l.b16 %v1807
        %v1864 = vpack.c.b16 %v1863, %v1862
        %1865 = vrot.lane.b32.xlu0 %v1164, 112
        %v1866 = vpop.permute.xlu0 %1865
        %v1869 = vsel %vm1002, %v1864, 0
        %1871 = vmatpush.bf16.msra.mxu0 0
        %1872 = vmatpush.bf16.msra.mxu0 0
        %1873 = vmatpush.bf16.msra.mxu0 0
        %1874 = vmatpush.bf16.msra.mxu0 0
        %1875 = vmatpush.bf16.msra.mxu0 0
        %1876 = vmatpush.bf16.msra.mxu0 0
        %1877 = vmatpush.bf16.msra.mxu0 0
        %1878 = vmatpush.bf16.msra.mxu0 %v1866
        %1879 = vmatmul.bf16.gmra.mxu0 %v1869
        %v1880 = vpop.f32.mrf.mxu0
        %v1881 = vadd.f32 0.0, %v1880
        %v1882 = vpop.f32.mrf.mxu0
        %v1883 = vadd.f32 0.0, %v1882
        %1884 = vdwg.mxu0
        %v1887 = vunpack.c.l.b16 %v1808
        %v1888 = vunpack.c.l.b16 %v1809
        %v1889 = vpack.c.b16 %v1888, %v1887
        %1890 = vrot.lane.b32.xlu0 %v1192, 112
        %v1891 = vpop.permute.xlu0 %1890
        %v1894 = vsel %vm1002, %v1889, 0
        %1896 = vmatpush.bf16.msra.mxu0 0
        %1897 = vmatpush.bf16.msra.mxu0 0
        %1898 = vmatpush.bf16.msra.mxu0 0
        %1899 = vmatpush.bf16.msra.mxu0 0
        %1900 = vmatpush.bf16.msra.mxu0 0
        %1901 = vmatpush.bf16.msra.mxu0 0
        %1902 = vmatpush.bf16.msra.mxu0 0
        %1903 = vmatpush.bf16.msra.mxu0 %v1891
        %1904 = vmatmul.bf16.gmra.mxu0 %v1894
        %v1905 = vpop.f32.mrf.mxu0
        %v1906 = vadd.f32 0.0, %v1905
        %v1907 = vpop.f32.mrf.mxu0
        %v1908 = vadd.f32 0.0, %v1907
        %1909 = vdwg.mxu0
        %v1910 = vpack.c.bf16 %v1833, %v1831
        %v1911 = vpack.c.bf16 %v1858, %v1856
        %v1912 = vpack.c.bf16 %v1883, %v1881
        %v1913 = vpack.c.bf16 %v1908, %v1906
        %v1914 = vld [vmem:[#allocation13 + $0x8] sm:$0xf]
        %v1916 = vsel %vm879, %v1910, 0
        %v1919 = vsel %vm879, %v1911, 0
        %v1922 = vsel %vm879, %v1912, 0
        %v1925 = vsel %vm879, %v1913, 0
        %v1928 = vsel %vm1533, %v1914, 0
        %1930 = vmatpush.bf16.msra.mxu0 0
        %1931 = vmatpush.bf16.msra.mxu0 0
        %1932 = vmatpush.bf16.msra.mxu0 0
        %1933 = vmatpush.bf16.msra.mxu0 0
        %1934 = vmatpush.bf16.msra.mxu0 0
        %1935 = vmatpush.bf16.msra.mxu0 0
        %1936 = vmatpush.bf16.msra.mxu0 0
        %1937 = vmatpush.bf16.msra.mxu0 %v1928
        %1938 = vmatmul.bf16.gmra.mxu0 %v1916
        %v1939 = vpop.f32.mrf.mxu0
        %v1940 = vadd.f32 0.0, %v1939
        %v1941 = vpop.f32.mrf.mxu0
        %v1942 = vadd.f32 0.0, %v1941
        %1943 = vmatmul.bf16.gmra.mxu0 %v1919
        %v1944 = vpop.f32.mrf.mxu0
        %v1945 = vadd.f32 0.0, %v1944
        %v1946 = vpop.f32.mrf.mxu0
        %v1947 = vadd.f32 0.0, %v1946
        %1948 = vmatmul.bf16.gmra.mxu0 %v1922
        %v1949 = vpop.f32.mrf.mxu0
        %v1950 = vadd.f32 0.0, %v1949
        %v1951 = vpop.f32.mrf.mxu0
        %v1952 = vadd.f32 0.0, %v1951
        %1953 = vmatmul.bf16.gmra.mxu0 %v1925
        %v1954 = vpop.f32.mrf.mxu0
        %v1955 = vadd.f32 0.0, %v1954
        %v1956 = vpop.f32.mrf.mxu0
        %v1957 = vadd.f32 0.0, %v1956
        %1958 = vdwg.mxu0
        %v1959 = vadd.f32 %v1591, %v1940
        %v1960 = vadd.f32 %v1593, %v1942
        %v1961 = vadd.f32 %v1596, %v1945
        %v1962 = vadd.f32 %v1598, %v1947
        %v1963 = vadd.f32 %v1601, %v1950
        %v1964 = vadd.f32 %v1603, %v1952
        %v1965 = vadd.f32 %v1606, %v1955
        %v1966 = vadd.f32 %v1608, %v1957
        %1967 = vrot.lane.b32.xlu0 %v873, 104
        %v1968 = vpop.permute.xlu0 %1967
        %1969 = vrot.lane.b32.xlu0 %v878, 104
        %v1970 = vpop.permute.xlu0 %1969
        %v1972 = vsel %vm879, %v1968, 0
        %v1975 = vsel %vm879, %v1970, 0
        %1977 = vmatpush.bf16.xpose.msra.mxu0 0
        %1978 = vmatpush.bf16.xpose.msra.mxu0 0
        %1979 = vmatpush.bf16.xpose.msra.mxu0 0
        %1980 = vmatpush.bf16.xpose.msra.mxu0 0
        %1981 = vmatpush.bf16.xpose.msra.mxu0 0
        %1982 = vmatpush.bf16.xpose.msra.mxu0 0
        %1983 = vmatpush.bf16.xpose.msra.mxu0 0
        %1984 = vmatpush.bf16.xpose.msra.mxu0 %v1975
        %1985 = vmatmul.bf16.gmra.mxu0 %v1972
        %v1986 = vpop.f32.mrf.mxu0
        %v1987 = vadd.f32 0.0, %v1986
        %v1988 = vpop.f32.mrf.mxu0
        %v1989 = vadd.f32 0.0, %v1988
        %1990 = vdwg.mxu0
        %1991 = vrot.lane.b32.xlu0 %v904, 104
        %v1992 = vpop.permute.xlu0 %1991
        %1993 = vrot.lane.b32.xlu0 %v909, 104
        %v1994 = vpop.permute.xlu0 %1993
        %v1996 = vsel %vm879, %v1992, 0
        %v1999 = vsel %vm879, %v1994, 0
        %2001 = vmatpush.bf16.xpose.msra.mxu0 0
        %2002 = vmatpush.bf16.xpose.msra.mxu0 0
        %2003 = vmatpush.bf16.xpose.msra.mxu0 0
        %2004 = vmatpush.bf16.xpose.msra.mxu0 0
        %2005 = vmatpush.bf16.xpose.msra.mxu0 0
        %2006 = vmatpush.bf16.xpose.msra.mxu0 0
        %2007 = vmatpush.bf16.xpose.msra.mxu0 0
        %2008 = vmatpush.bf16.xpose.msra.mxu0 %v1999
        %2009 = vmatmul.bf16.gmra.mxu0 %v1996
        %v2010 = vpop.f32.mrf.mxu0
        %v2011 = vadd.f32 0.0, %v2010
        %v2012 = vpop.f32.mrf.mxu0
        %v2013 = vadd.f32 0.0, %v2012
        %2014 = vdwg.mxu0
        %2015 = vrot.lane.b32.xlu0 %v934, 104
        %v2016 = vpop.permute.xlu0 %2015
        %2017 = vrot.lane.b32.xlu0 %v939, 104
        %v2018 = vpop.permute.xlu0 %2017
        %v2020 = vsel %vm879, %v2016, 0
        %v2023 = vsel %vm879, %v2018, 0
        %2025 = vmatpush.bf16.xpose.msra.mxu0 0
        %2026 = vmatpush.bf16.xpose.msra.mxu0 0
        %2027 = vmatpush.bf16.xpose.msra.mxu0 0
        %2028 = vmatpush.bf16.xpose.msra.mxu0 0
        %2029 = vmatpush.bf16.xpose.msra.mxu0 0
        %2030 = vmatpush.bf16.xpose.msra.mxu0 0
        %2031 = vmatpush.bf16.xpose.msra.mxu0 0
        %2032 = vmatpush.bf16.xpose.msra.mxu0 %v2023
        %2033 = vmatmul.bf16.gmra.mxu0 %v2020
        %v2034 = vpop.f32.mrf.mxu0
        %v2035 = vadd.f32 0.0, %v2034
        %v2036 = vpop.f32.mrf.mxu0
        %v2037 = vadd.f32 0.0, %v2036
        %2038 = vdwg.mxu0
        %2039 = vrot.lane.b32.xlu0 %v964, 104
        %v2040 = vpop.permute.xlu0 %2039
        %2041 = vrot.lane.b32.xlu0 %v969, 104
        %v2042 = vpop.permute.xlu0 %2041
        %v2044 = vsel %vm879, %v2040, 0
        %v2047 = vsel %vm879, %v2042, 0
        %2049 = vmatpush.bf16.xpose.msra.mxu0 0
        %2050 = vmatpush.bf16.xpose.msra.mxu0 0
        %2051 = vmatpush.bf16.xpose.msra.mxu0 0
        %2052 = vmatpush.bf16.xpose.msra.mxu0 0
        %2053 = vmatpush.bf16.xpose.msra.mxu0 0
        %2054 = vmatpush.bf16.xpose.msra.mxu0 0
        %2055 = vmatpush.bf16.xpose.msra.mxu0 0
        %2056 = vmatpush.bf16.xpose.msra.mxu0 %v2047
        %2057 = vmatmul.bf16.gmra.mxu0 %v2044
        %v2058 = vpop.f32.mrf.mxu0
        %v2059 = vadd.f32 0.0, %v2058
        %v2060 = vpop.f32.mrf.mxu0
        %v2061 = vadd.f32 0.0, %v2060
        %2062 = vdwg.mxu0
        %v2063 = vsel %vm992, %v1987, -1e+30
        %v2064 = vsel %vm993, %v1989, -1e+30
        %v2065 = vsel %vm992, %v2011, -1e+30
        %v2066 = vsel %vm993, %v2013, -1e+30
        %v2067 = vsel %vm992, %v2035, -1e+30
        %v2068 = vsel %vm993, %v2037, -1e+30
        %v2069 = vsel %vm992, %v2059, -1e+30
        %v2070 = vsel %vm993, %v2061, -1e+30
        %v2071 = vsel %vm1002, %v2063, -inf
        %2072 = vmax.xlane.f32.xlu0 %v2071
        %v2073 = vpop.xlane.xlu0 %2072
        %v2074 = vsel %vm1002, %v2064, -inf
        %2075 = vmax.xlane.f32.xlu0 %v2074
        %v2076 = vpop.xlane.xlu0 %2075
        %v2077 = vsel %vm1002, %v2065, -inf
        %2078 = vmax.xlane.f32.xlu0 %v2077
        %v2079 = vpop.xlane.xlu0 %2078
        %v2080 = vsel %vm1002, %v2066, -inf
        %2081 = vmax.xlane.f32.xlu0 %v2080
        %v2082 = vpop.xlane.xlu0 %2081
        %v2083 = vsel %vm1002, %v2067, -inf
        %2084 = vmax.xlane.f32.xlu0 %v2083
        %v2085 = vpop.xlane.xlu0 %2084
        %v2086 = vsel %vm1002, %v2068, -inf
        %2087 = vmax.xlane.f32.xlu0 %v2086
        %v2088 = vpop.xlane.xlu0 %2087
        %v2089 = vsel %vm1002, %v2069, -inf
        %2090 = vmax.xlane.f32.xlu0 %v2089
        %v2091 = vpop.xlane.xlu0 %2090
        %v2092 = vsel %vm1002, %v2070, -inf
        %2093 = vmax.xlane.f32.xlu0 %v2092
        %v2094 = vpop.xlane.xlu0 %2093
        %v2095 = vsub.f32 %v2063, %v2073
        %v2096 = vsub.f32 %v2064, %v2076
        %v2097 = vsub.f32 %v2065, %v2079
        %v2098 = vsub.f32 %v2066, %v2082
        %v2099 = vsub.f32 %v2067, %v2085
        %v2100 = vsub.f32 %v2068, %v2088
        %v2101 = vsub.f32 %v2069, %v2091
        %v2102 = vsub.f32 %v2070, %v2094
        %v2103 = vmul.f32 %v2095, 1.442695
        %v2104 = vpow.pop %v2103
        %v2105 = vmul.f32 %v2096, 1.442695
        %v2106 = vpow.pop %v2105
        %v2107 = vmul.f32 %v2097, 1.442695
        %v2108 = vpow.pop %v2107
        %v2109 = vmul.f32 %v2098, 1.442695
        %v2110 = vpow.pop %v2109
        %v2111 = vmul.f32 %v2099, 1.442695
        %v2112 = vpow.pop %v2111
        %v2113 = vmul.f32 %v2100, 1.442695
        %v2114 = vpow.pop %v2113
        %v2115 = vmul.f32 %v2101, 1.442695
        %v2116 = vpow.pop %v2115
        %v2117 = vmul.f32 %v2102, 1.442695
        %v2118 = vpow.pop %v2117
        %v2119 = vsel %vm1002, %v2104, 0.0
        %2120 = vadd.xlane.f32.xlu0 %v2119
        %v2121 = vpop.xlane.xlu0 %2120
        %v2122 = vsel %vm1002, %v2106, 0.0
        %2123 = vadd.xlane.f32.xlu0 %v2122
        %v2124 = vpop.xlane.xlu0 %2123
        %v2125 = vsel %vm1002, %v2108, 0.0
        %2126 = vadd.xlane.f32.xlu0 %v2125
        %v2127 = vpop.xlane.xlu0 %2126
        %v2128 = vsel %vm1002, %v2110, 0.0
        %2129 = vadd.xlane.f32.xlu0 %v2128
        %v2130 = vpop.xlane.xlu0 %2129
        %v2131 = vsel %vm1002, %v2112, 0.0
        %2132 = vadd.xlane.f32.xlu0 %v2131
        %v2133 = vpop.xlane.xlu0 %2132
        %v2134 = vsel %vm1002, %v2114, 0.0
        %2135 = vadd.xlane.f32.xlu0 %v2134
        %v2136 = vpop.xlane.xlu0 %2135
        %v2137 = vsel %vm1002, %v2116, 0.0
        %2138 = vadd.xlane.f32.xlu0 %v2137
        %v2139 = vpop.xlane.xlu0 %2138
        %v2140 = vsel %vm1002, %v2118, 0.0
        %2141 = vadd.xlane.f32.xlu0 %v2140
        %v2142 = vpop.xlane.xlu0 %2141
        %v2143 = vrcp.pop %v2121
        %v2144 = vrcp.pop %v2124
        %v2145 = vrcp.pop %v2127
        %v2146 = vrcp.pop %v2130
        %v2147 = vrcp.pop %v2133
        %v2148 = vrcp.pop %v2136
        %v2149 = vrcp.pop %v2139
        %v2150 = vrcp.pop %v2142
        %v2151 = vmul.f32 %v2104, %v2143
        %v2152 = vmul.f32 %v2106, %v2144
        %v2153 = vmul.f32 %v2108, %v2145
        %v2154 = vmul.f32 %v2110, %v2146
        %v2155 = vmul.f32 %v2112, %v2147
        %v2156 = vmul.f32 %v2114, %v2148
        %v2157 = vmul.f32 %v2116, %v2149
        %v2158 = vmul.f32 %v2118, %v2150
        %v2159 = vpack.c.bf16 %v2151, %v2151
        %v2160 = vpack.c.bf16 %v2152, %v2152
        %v2161 = vpack.c.bf16 %v2153, %v2153
        %v2162 = vpack.c.bf16 %v2154, %v2154
        %v2163 = vpack.c.bf16 %v2155, %v2155
        %v2164 = vpack.c.bf16 %v2156, %v2156
        %v2165 = vpack.c.bf16 %v2157, %v2157
        %v2166 = vpack.c.bf16 %v2158, %v2158
        %v2169 = vunpack.c.l.b16 %v2159
        %v2170 = vunpack.c.l.b16 %v2160
        %v2171 = vpack.c.b16 %v2170, %v2169
        %2172 = vrot.lane.b32.xlu0 %v1108, 104
        %v2173 = vpop.permute.xlu0 %2172
        %v2176 = vsel %vm1002, %v2171, 0
        %2178 = vmatpush.bf16.msra.mxu0 0
        %2179 = vmatpush.bf16.msra.mxu0 0
        %2180 = vmatpush.bf16.msra.mxu0 0
        %2181 = vmatpush.bf16.msra.mxu0 0
        %2182 = vmatpush.bf16.msra.mxu0 0
        %2183 = vmatpush.bf16.msra.mxu0 0
        %2184 = vmatpush.bf16.msra.mxu0 0
        %2185 = vmatpush.bf16.msra.mxu0 %v2173
        %2186 = vmatmul.bf16.gmra.mxu0 %v2176
        %v2187 = vpop.f32.mrf.mxu0
        %v2188 = vadd.f32 0.0, %v2187
        %v2189 = vpop.f32.mrf.mxu0
        %v2190 = vadd.f32 0.0, %v2189
        %2191 = vdwg.mxu0
        %v2194 = vunpack.c.l.b16 %v2161
        %v2195 = vunpack.c.l.b16 %v2162
        %v2196 = vpack.c.b16 %v2195, %v2194
        %2197 = vrot.lane.b32.xlu0 %v1136, 104
        %v2198 = vpop.permute.xlu0 %2197
        %v2201 = vsel %vm1002, %v2196, 0
        %2203 = vmatpush.bf16.msra.mxu0 0
        %2204 = vmatpush.bf16.msra.mxu0 0
        %2205 = vmatpush.bf16.msra.mxu0 0
        %2206 = vmatpush.bf16.msra.mxu0 0
        %2207 = vmatpush.bf16.msra.mxu0 0
        %2208 = vmatpush.bf16.msra.mxu0 0
        %2209 = vmatpush.bf16.msra.mxu0 0
        %2210 = vmatpush.bf16.msra.mxu0 %v2198
        %2211 = vmatmul.bf16.gmra.mxu0 %v2201
        %v2212 = vpop.f32.mrf.mxu0
        %v2213 = vadd.f32 0.0, %v2212
        %v2214 = vpop.f32.mrf.mxu0
        %v2215 = vadd.f32 0.0, %v2214
        %2216 = vdwg.mxu0
        %v2219 = vunpack.c.l.b16 %v2163
        %v2220 = vunpack.c.l.b16 %v2164
        %v2221 = vpack.c.b16 %v2220, %v2219
        %2222 = vrot.lane.b32.xlu0 %v1164, 104
        %v2223 = vpop.permute.xlu0 %2222
        %v2226 = vsel %vm1002, %v2221, 0
        %2228 = vmatpush.bf16.msra.mxu0 0
        %2229 = vmatpush.bf16.msra.mxu0 0
        %2230 = vmatpush.bf16.msra.mxu0 0
        %2231 = vmatpush.bf16.msra.mxu0 0
        %2232 = vmatpush.bf16.msra.mxu0 0
        %2233 = vmatpush.bf16.msra.mxu0 0
        %2234 = vmatpush.bf16.msra.mxu0 0
        %2235 = vmatpush.bf16.msra.mxu0 %v2223
        %2236 = vmatmul.bf16.gmra.mxu0 %v2226
        %v2237 = vpop.f32.mrf.mxu0
        %v2238 = vadd.f32 0.0, %v2237
        %v2239 = vpop.f32.mrf.mxu0
        %v2240 = vadd.f32 0.0, %v2239
        %2241 = vdwg.mxu0
        %v2244 = vunpack.c.l.b16 %v2165
        %v2245 = vunpack.c.l.b16 %v2166
        %v2246 = vpack.c.b16 %v2245, %v2244
        %2247 = vrot.lane.b32.xlu0 %v1192, 104
        %v2248 = vpop.permute.xlu0 %2247
        %v2251 = vsel %vm1002, %v2246, 0
        %2253 = vmatpush.bf16.msra.mxu0 0
        %2254 = vmatpush.bf16.msra.mxu0 0
        %2255 = vmatpush.bf16.msra.mxu0 0
        %2256 = vmatpush.bf16.msra.mxu0 0
        %2257 = vmatpush.bf16.msra.mxu0 0
        %2258 = vmatpush.bf16.msra.mxu0 0
        %2259 = vmatpush.bf16.msra.mxu0 0
        %2260 = vmatpush.bf16.msra.mxu0 %v2248
        %2261 = vmatmul.bf16.gmra.mxu0 %v2251
        %v2262 = vpop.f32.mrf.mxu0
        %v2263 = vadd.f32 0.0, %v2262
        %v2264 = vpop.f32.mrf.mxu0
        %v2265 = vadd.f32 0.0, %v2264
        %2266 = vdwg.mxu0
        %v2267 = vpack.c.bf16 %v2190, %v2188
        %v2268 = vpack.c.bf16 %v2215, %v2213
        %v2269 = vpack.c.bf16 %v2240, %v2238
        %v2270 = vpack.c.bf16 %v2265, %v2263
        %v2271 = vld [vmem:[#allocation13 + $0xc] sm:$0xf]
        %v2273 = vsel %vm879, %v2267, 0
        %v2276 = vsel %vm879, %v2268, 0
        %v2279 = vsel %vm879, %v2269, 0
        %v2282 = vsel %vm879, %v2270, 0
        %v2285 = vsel %vm1533, %v2271, 0
        %2287 = vmatpush.bf16.msra.mxu0 0
        %2288 = vmatpush.bf16.msra.mxu0 0
        %2289 = vmatpush.bf16.msra.mxu0 0
        %2290 = vmatpush.bf16.msra.mxu0 0
        %2291 = vmatpush.bf16.msra.mxu0 0
        %2292 = vmatpush.bf16.msra.mxu0 0
        %2293 = vmatpush.bf16.msra.mxu0 0
        %2294 = vmatpush.bf16.msra.mxu0 %v2285
        %2295 = vmatmul.bf16.gmra.mxu0 %v2273
        %v2296 = vpop.f32.mrf.mxu0
        %v2297 = vadd.f32 0.0, %v2296
        %v2298 = vpop.f32.mrf.mxu0
        %v2299 = vadd.f32 0.0, %v2298
        %2300 = vmatmul.bf16.gmra.mxu0 %v2276
        %v2301 = vpop.f32.mrf.mxu0
        %v2302 = vadd.f32 0.0, %v2301
        %v2303 = vpop.f32.mrf.mxu0
        %v2304 = vadd.f32 0.0, %v2303
        %2305 = vmatmul.bf16.gmra.mxu0 %v2279
        %v2306 = vpop.f32.mrf.mxu0
        %v2307 = vadd.f32 0.0, %v2306
        %v2308 = vpop.f32.mrf.mxu0
        %v2309 = vadd.f32 0.0, %v2308
        %2310 = vmatmul.bf16.gmra.mxu0 %v2282
        %v2311 = vpop.f32.mrf.mxu0
        %v2312 = vadd.f32 0.0, %v2311
        %v2313 = vpop.f32.mrf.mxu0
        %v2314 = vadd.f32 0.0, %v2313
        %2315 = vdwg.mxu0
        %v2316 = vadd.f32 %v1959, %v2297
        %v2317 = vadd.f32 %v1960, %v2299
        %v2318 = vadd.f32 %v1961, %v2302
        %v2319 = vadd.f32 %v1962, %v2304
        %v2320 = vadd.f32 %v1963, %v2307
        %v2321 = vadd.f32 %v1964, %v2309
        %v2322 = vadd.f32 %v1965, %v2312
        %v2323 = vadd.f32 %v1966, %v2314
        %v2324 = vld [vmem:[%s10] sm:$0x1]
        %v2326 = vperm.slane %v2324, 0
        %v2328 = vadd.f32 %v2316, %v2326
        %v2329 = vadd.f32 %v2317, %v2326
        %v2330 = vadd.f32 %v2318, %v2326
        %v2331 = vadd.f32 %v2319, %v2326
        %v2332 = vadd.f32 %v2320, %v2326
        %v2333 = vadd.f32 %v2321, %v2326
        %v2334 = vadd.f32 %v2322, %v2326
        %v2335 = vadd.f32 %v2323, %v2326
        %2336 = vst.msk [vmem:[%s556] sm:$0xff] %vm626, %v2328
        %2337 = vst.msk [vmem:[%s556 + $0x8] sm:$0xff] %vm626, %v2329
        %2338 = vst.msk [vmem:[%s556 + $0x10] sm:$0xff] %vm626, %v2330
        %2339 = vst.msk [vmem:[%s556 + $0x18] sm:$0xff] %vm626, %v2331
        %2340 = vst.msk [vmem:[%s556 + $0x20] sm:$0xff] %vm626, %v2332
        %2341 = vst.msk [vmem:[%s556 + $0x28] sm:$0xff] %vm626, %v2333
        %2342 = vst.msk [vmem:[%s556 + $0x30] sm:$0xff] %vm626, %v2334
        %2343 = vst.msk [vmem:[%s556 + $0x38] sm:$0xff] %vm626, %v2335
        %s2344 = sand.u32 %s287, 1
        %s2345 = scalar_lea.sflag [#allocation4], %s2344
        %s2346 = sand.u32 %s287, 1
        %s2347 = smul.addr %s2346, 64
        %s2348 = scalar_lea.vmem [#allocation14], %s2347
        // Predicated region
        $region93: #{tpu_custom_call.1} parent=63 // pred_check
          %p2349 = pneg %p297
        $region94: #{tpu_custom_call.1} parent=63 // pred_check_branch
          %2351 = sbr.rel (%p2349) target = $region96
        $region95: #{tpu_custom_call.1} parent=63 // pred_region
          %s2352 = smul.u32 4, %s33
          %2354 = vsyncadd %s2345, 0
          %s2355 = smul.addr %s2352, 2
          %s2356 = smul.addr %s2355, 8
          %s2357 = scalar_lea.hbm %s11, %s2356
          %s2358 = sshll.u32 %s2348, 4
          %s2359 = int_to_ptr.vmem [resolvable:$true] %s2358
          %s2360 = sshll.u32 %s2357, 4
          %s2361 = int_to_ptr.hbm [resolvable:$true] %s2360
          %2366 = dma.vmem_to_hbm [thread:$0]  %s2359, 1024, %s2361, %s2345, 128, 128, 8
        $region96: #{tpu_custom_call.1} parent=63 // pred_fallthru
          _
      $region64: #{tpu_custom_call.1} parent=5 // pred_fallthru
        _
      %p2367 = scmp.le.s32.totalorder 2, %s28
      // Predicated region
      $region97: #{tpu_custom_call.1} parent=5 // pred_check
        %p2368 = pneg %p2367
      $region98: #{tpu_custom_call.1} parent=5 // pred_check_branch
        %2370 = sbr.rel (%p2368) target = $region100
      $region99: #{tpu_custom_call.1} parent=5 // pred_region
        %s2371 = ssub.s32 %s28, 2
        // Predicated region
        $region101: #{tpu_custom_call.1} parent=99 // pred_check
          %p2372 = pneg %p303
        $region102: #{tpu_custom_call.1} parent=99 // pred_check_branch
          %2374 = sbr.rel (%p2372) target = $region104
        $region103: #{tpu_custom_call.1} parent=99 // pred_region
          %s2375 = sand.u32 %s288, 1
          %s2376 = scalar_lea.sflag [#allocation4], %s2375
          %s2377 = sand.u32 %s288, 1
          %s2378 = smul.addr %s2377, 64
          %s2379 = scalar_lea.vmem [#allocation14], %s2378
          %2381 = dma.done %s2376, 1024
        $region104: #{tpu_custom_call.1} parent=99 // pred_fallthru
          _
      $region100: #{tpu_custom_call.1} parent=5 // pred_fallthru
        _
    $region6: #{tpu_custom_call.1} parent=1 // loop_footer
      %s32 = sadd.s32 1, %s28
    $region7: #{tpu_custom_call.1} parent=1 // loop_footer_branch
      %27 = sbr.rel target = $region3
    $region8: #{tpu_custom_call.1} parent=1 // loop_exit
      _
    %2382 = vsyncpa [#allocation3], 1
    %s2383 = scalar_lea.sflag [#allocation3], 1
    %2384 = vsyncpa %s2383, 1
    %2385 = vsyncpa [#allocation6], 1
    %s2386 = scalar_lea.sflag [#allocation6], 1
    %2387 = vsyncpa %s2386, 1
    %2388 = vsyncpa [#allocation9], 1
    %2389 = vsyncpa [#allocation12], 1
    %2390 = vsyncpa [#allocation4], 1
    %s2391 = scalar_lea.sflag [#allocation4], 1
    %2392 = vsyncpa %s2391, 1

</llo_original>
